<compile_context>
chip_gen: v5e
topology: v5e:2x2
jax: 0.10.0
libtpu: 0.0.40
codegen_flags: <defaults>
</compile_context>

<pallas_src>
import functools

import jax
import jax.numpy as jnp
from jax.experimental import pallas as pl
from jax.experimental.pallas import tpu as pltpu
from jax.scipy.linalg import block_diag

HIDDEN = 32          # hidden_size
HEADS = 4
LEAKY_SLOPE = 0.01   # nn.LeakyReLU default
GAT_SLOPE = 0.2      # GATv2 negative_slope default
BN_EPS = 1e-5


def _vmem():
    return pl.BlockSpec(memory_space=pltpu.MemorySpace.VMEM)


def _leaky(x, slope=LEAKY_SLOPE):
    return jnp.where(x > 0, x, slope * x)


# ----------------------------- Pallas kernels ------------------------------

def _node_path_kernel(x_ref, w1_ref, b1_ref, w2_ref, b2_ref, wlr_ref, blr_ref,
                      o_ref):
    # Fused: 3 Submodel heads (block-diagonal, BN folded) + fused GAT lin_l|lin_r.
    # Output last dim = 2*heads*H = 256 -> lane-dense unmasked stores.
    h = _leaky(jnp.dot(x_ref[...], w1_ref[...],
                       preferred_element_type=jnp.float32) + b1_ref[...])
    g = _leaky(jnp.dot(h, w2_ref[...],
                       preferred_element_type=jnp.float32) + b2_ref[...])
    o_ref[...] = jnp.dot(g, wlr_ref[...],
                         preferred_element_type=jnp.float32) + blr_ref[...]


def node_path(graph_matrix, w1, b1, w2, b2, wlr, blr):
    n = graph_matrix.shape[0]
    d_out = wlr.shape[1]
    return pl.pallas_call(
        _node_path_kernel,
        out_shape=jax.ShapeDtypeStruct((n, d_out), jnp.float32),
        in_specs=[_vmem()] * 7,
        out_specs=_vmem(),
    )(graph_matrix, w1, b1, w2, b2, wlr, blr)


def _gat_kernel(xlr_ref, src_ref, dst_ref, dstr_ref, attbd_ref, hexp_ref,
                bias_ref, o_ref, *, hd):
    # Fused GATv2: one-hot gather (built in-kernel from indices), per-edge
    # per-head logits via block-diag att matmul, segment softmax over dst,
    # alpha broadcast via head-expand matmul, scatter-sum aggregation.
    n = xlr_ref.shape[0]
    e2 = src_ref.shape[0]
    xl = xlr_ref[:, :hd]                       # lin_l(x)
    xr = xlr_ref[:, hd:]                       # lin_r(x)

    node_iota = jax.lax.broadcasted_iota(jnp.int32, (e2, n), 1)
    gsrc = (src_ref[...] == node_iota).astype(jnp.float32)      # [2E, N]
    gdst = (dst_ref[...] == node_iota).astype(jnp.float32)      # [2E, N]
    scatter = (dstr_ref[...] ==
               jax.lax.broadcasted_iota(jnp.int32, (n, e2), 0)
               ).astype(jnp.float32)                            # [N, 2E]

    xl_src = jnp.dot(gsrc, xl, preferred_element_type=jnp.float32)   # [2E, HD]
    xr_dst = jnp.dot(gdst, xr, preferred_element_type=jnp.float32)   # [2E, HD]

    s = xl_src + xr_dst
    s = jnp.where(s > 0, s, GAT_SLOPE * s)
    logits = jnp.dot(s, attbd_ref[...],
                     preferred_element_type=jnp.float32)             # [2E, heads]

    # Segment softmax over destination nodes.  A per-head global max shift is
    # used: the constant cancels within each segment, so this equals the
    # segment softmax up to fp rounding.
    ex = jnp.exp(logits - jnp.max(logits, axis=0, keepdims=True))    # [2E, heads]
    denom_n = jnp.dot(scatter, ex, preferred_element_type=jnp.float32)   # [N, heads]
    denom_e = jnp.dot(gdst, denom_n, preferred_element_type=jnp.float32)  # [2E, heads]
    alpha = ex / denom_e                                             # [2E, heads]

    # Broadcast alpha per head over the H channels with an MXU matmul
    # (no [2E, heads*H] alpha materialized in HBM).
    alpha_b = jnp.dot(alpha, hexp_ref[...],
                      preferred_element_type=jnp.float32)            # [2E, HD]
    h1 = jnp.dot(scatter, xl_src * alpha_b,
                 preferred_element_type=jnp.float32) + bias_ref[...]
    o_ref[...] = h1


def gat_conv(xlr, src, dst, att_bd, head_expand, gat_bias, heads, hidden):
    n = xlr.shape[0]
    hd = heads * hidden
    e2 = src.shape[0]
    return pl.pallas_call(
        functools.partial(_gat_kernel, hd=hd),
        out_shape=jax.ShapeDtypeStruct((n, hd), jnp.float32),
        in_specs=[_vmem()] * 7,
        out_specs=_vmem(),
    )(xlr,
      src.reshape(e2, 1).astype(jnp.int32),
      dst.reshape(e2, 1).astype(jnp.int32),
      dst.reshape(1, e2).astype(jnp.int32),
      att_bd, head_expand, gat_bias)


def _edge_tail_kernel(h1_ref, eidx_ref, inter_ref,
                      wphi_ref, bphi_ref,
                      wr1_ref, br1_ref, wr2_ref, br2_ref,
                      wco1_ref, bco1_ref, wco2_ref, bco2_ref,
                      wf1_ref, bf1_ref, wf2_ref, bf2_ref, wf3_ref, bf3_ref,
                      o_ref):
    # Fused edge MLP tail: gather h_src/h_dst (stacked -> one phi matmul),
    # phi1 + rho1, block-diag co_p/co_loc heads, concat, fc stack + sigmoid.
    n = h1_ref.shape[0]
    e2 = eidx_ref.shape[0]
    e = e2 // 2

    egath = (eidx_ref[...] ==
             jax.lax.broadcasted_iota(jnp.int32, (e2, n), 1)).astype(jnp.float32)
    hh = jnp.dot(egath, h1_ref[...], preferred_element_type=jnp.float32)   # [2E, 4H]

    uv = _leaky(jnp.dot(hh, wphi_ref[...],
                        preferred_element_type=jnp.float32) + bphi_ref[...])  # [2E, 2H]
    preds1 = uv[:e] + uv[e:]                                                  # [E, 2H]

    y = _leaky(jnp.dot(preds1, wr1_ref[...],
                       preferred_element_type=jnp.float32) + br1_ref[...])
    y = _leaky(jnp.dot(y, wr2_ref[...],
                       preferred_element_type=jnp.float32) + br2_ref[...])    # [E, H]

    co = _leaky(jnp.dot(inter_ref[...], wco1_ref[...],
                        preferred_element_type=jnp.float32) + bco1_ref[...])
    co = _leaky(jnp.dot(co, wco2_ref[...],
                        preferred_element_type=jnp.float32) + bco2_ref[...])  # [E, 2H]

    z = jnp.concatenate([y, co], axis=1)                                      # [E, 3H]
    z = _leaky(jnp.dot(z, wf1_ref[...],
                       preferred_element_type=jnp.float32) + bf1_ref[...])
    z = _leaky(jnp.dot(z, wf2_ref[...],
                       preferred_element_type=jnp.float32) + bf2_ref[...])
    z = jax.nn.sigmoid(jnp.dot(z, wf3_ref[...],
                               preferred_element_type=jnp.float32) + bf3_ref[...])
    o_ref[...] = z   # [E, 1] final output (unavoidably narrow)


def edge_tail(h1, eidx, interaction, fp):
    e2 = eidx.shape[0]
    e = e2 // 2
    return pl.pallas_call(
        _edge_tail_kernel,
        out_shape=jax.ShapeDtypeStruct((e, 1), jnp.float32),
        in_specs=[_vmem()] * 19,
        out_specs=_vmem(),
    )(h1, eidx.reshape(e2, 1).astype(jnp.int32), interaction,
      fp["Wphi"], fp["bphi"], fp["Wr1"], fp["br1"], fp["Wr2"], fp["br2"],
      fp["Wco1"], fp["bco1"], fp["Wco2"], fp["bco2"],
      fp["Wf1"], fp["bf1"], fp["Wf2"], fp["bf2"], fp["Wf3"], fp["bf3"])


# --------------------------- parameter utilities ---------------------------

def _uni(key, shape):
    return jax.random.uniform(key, shape, jnp.float32, -0.2, 0.2)


def make_submodel_params(key, in_size, hidden):
    h2 = hidden // 2
    k = jax.random.split(key, 8)
    return dict(
        W1=_uni(k[0], (in_size, h2)), b1=_uni(k[1], (h2,)),
        g1=_uni(k[2], (h2,)), be1=_uni(k[3], (h2,)),
        W2=_uni(k[4], (h2, hidden)), b2=_uni(k[5], (hidden,)),
        g2=_uni(k[6], (hidden,)), be2=_uni(k[7], (hidden,)),
    )


def bn_fold_linear(W, b, gamma, beta):
    # eval-mode BatchNorm1d (running mean=0, var=1) folded into the Linear.
    scale = gamma / jnp.sqrt(1.0 + BN_EPS)
    return W * scale[None, :], b * scale + beta


def fold_submodel(p):
    W1, b1 = bn_fold_linear(p["W1"], p["b1"], p["g1"], p["be1"])
    W2, b2 = bn_fold_linear(p["W2"], p["b2"], p["g2"], p["be2"])
    return W1, b1, W2, b2


def prepare_params(params, hidden, heads):
    """Fold BN into Linears and assemble block-diagonal fused weights."""
    def row(b):
        return b.reshape(1, -1)

    # node feature heads -> block-diagonal
    gW1, gb1, gW2, gb2 = fold_submodel(params["g_head"])
    pW1, pb1, pW2, pb2 = fold_submodel(params["p_head"])
    lW1, lb1, lW2, lb2 = fold_submodel(params["l_head"])
    node_W1 = block_diag(gW1, pW1, lW1)
    node_b1 = row(jnp.concatenate([gb1, pb1, lb1]))
    node_W2 = block_diag(gW2, pW2, lW2)
    node_b2 = row(jnp.concatenate([gb2, pb2, lb2]))

    gat = params["gat1"]
    Wlr = jnp.concatenate([gat["Wl"], gat["Wr"]], axis=1)      # [3H, 2*heads*H]
    blr = row(jnp.concatenate([gat["bl"], gat["br"]]))
    head_expand = jnp.kron(jnp.eye(heads, dtype=jnp.float32),
                           jnp.ones((1, hidden), jnp.float32))  # [heads, heads*H]
    att_bd = head_expand.T * gat["att"][:, None]                # [heads*H, heads]
    gat_bias = row(gat["bias"])

    phi = params["phi1"]
    Wphi, bphi = bn_fold_linear(phi["W"], phi["b"], phi["g"], phi["be"])

    rho = params["rho1"]
    Wr1, br1 = bn_fold_linear(rho["W1"], rho["b1"], rho["g1"], rho["be1"])
    Wr2, br2 = bn_fold_linear(rho["W2"], rho["b2"], rho["g2"], rho["be2"])

    # co_p / co_loc heads -> block-diagonal over the 2 interaction columns
    cpW1, cpb1, cpW2, cpb2 = fold_submodel(params["co_p_head"])
    clW1, clb1, clW2, clb2 = fold_submodel(params["co_loc_head"])
    Wco1 = block_diag(cpW1, clW1)
    bco1 = row(jnp.concatenate([cpb1, clb1]))
    Wco2 = block_diag(cpW2, clW2)
    bco2 = row(jnp.concatenate([cpb2, clb2]))

    fc = params["fc"]
    Wf1, bf1 = bn_fold_linear(fc["W1"], fc["b1"], fc["g1"], fc["be1"])
    Wf2, bf2 = bn_fold_linear(fc["W2"], fc["b2"], fc["g2"], fc["be2"])

    return dict(
        node_W1=node_W1, node_b1=node_b1, node_W2=node_W2, node_b2=node_b2,
        Wlr=Wlr, blr=blr, att_bd=att_bd, head_expand=head_expand,
        gat_bias=gat_bias,
        Wphi=Wphi, bphi=row(bphi),
        Wr1=Wr1, br1=row(br1), Wr2=Wr2, br2=row(br2),
        Wco1=Wco1, bco1=bco1, Wco2=Wco2, bco2=bco2,
        Wf1=Wf1, bf1=row(bf1), Wf2=Wf2, bf2=row(bf2),
        Wf3=fc["W3"], bf3=row(fc["b3"]),
    )


# ------------------------------ model forward ------------------------------

def spider_mouse_forward(fparams, graph_matrix, interaction, edge_index,
                         hidden=HIDDEN, heads=HEADS):
    # edge_index2 = concat((edge_index, edge_index.permute(0,1)), dim=0)
    edge_index2 = jnp.concatenate([edge_index, edge_index], axis=0)   # [2E, 2]
    src = edge_index2[:, 0].astype(jnp.int32)
    dst = edge_index2[:, 1].astype(jnp.int32)

    # K1: graph_matrix -> fused g/p/l heads -> fused lin_l|lin_r   [N, 2*heads*H]
    xlr = node_path(graph_matrix,
                    fparams["node_W1"], fparams["node_b1"],
                    fparams["node_W2"], fparams["node_b2"],
                    fparams["Wlr"], fparams["blr"])

    # K2: GATv2 gather + logits + segment softmax + aggregation    [N, heads*H]
    h1 = gat_conv(xlr, src, dst, fparams["att_bd"], fparams["head_expand"],
                  fparams["gat_bias"], heads, hidden)

    # PyG return_attention_weights -> (out, (edge_index, alpha)); torch code
    # keeps edge_index as `attn`.
    attn = edge_index2.T                                              # [2, 2E]

    # K3: fused edge MLP tail                                        [E, 1]
    eidx = jnp.concatenate([edge_index[:, 0], edge_index[:, 1]]).astype(jnp.int32)
    preds = edge_tail(h1, eidx, interaction, fparams)
    return preds.reshape(-1), attn


# ----------------------------------- main -----------------------------------

if __name__ == "__main__":
    key = jax.random.PRNGKey(0)

    expression_size, prot_size, locations_size = 32, 16, 8
    g_len, p_len, loc_len = expression_size // 2, prot_size // 2, locations_size // 2
    n_nodes, n_edges = 16, 8
    H = HIDDEN

    pkeys = jax.random.split(key, 32)
    params = {
        "g_head": make_submodel_params(pkeys[0], g_len, H),
        "p_head": make_submodel_params(pkeys[1], p_len, H),
        "l_head": make_submodel_params(pkeys[2], loc_len, H),
        "co_p_head": make_submodel_params(pkeys[3], 1, H),
        "co_loc_head": make_submodel_params(pkeys[4], 1, H),
        "gat1": dict(
            Wl=_uni(pkeys[5], (3 * H, HEADS * H)), bl=_uni(pkeys[6], (HEADS * H,)),
            Wr=_uni(pkeys[7], (3 * H, HEADS * H)), br=_uni(pkeys[8], (HEADS * H,)),
            att=_uni(pkeys[9], (HEADS * H,)), bias=_uni(pkeys[10], (HEADS * H,)),
        ),
        "phi1": dict(
            W=_uni(pkeys[11], (4 * H, 2 * H)), b=_uni(pkeys[12], (2 * H,)),
            g=_uni(pkeys[13], (2 * H,)), be=_uni(pkeys[14], (2 * H,)),
        ),
        "rho1": dict(
            W1=_uni(pkeys[15], (2 * H, 2 * H)), b1=_uni(pkeys[16], (2 * H,)),
            g1=_uni(pkeys[17], (2 * H,)), be1=_uni(pkeys[18], (2 * H,)),
            W2=_uni(pkeys[19], (2 * H, H)), b2=_uni(pkeys[20], (H,)),
            g2=_uni(pkeys[21], (H,)), be2=_uni(pkeys[22], (H,)),
        ),
        "fc": dict(
            W1=_uni(pkeys[23], (3 * H, H)), b1=_uni(pkeys[24], (H,)),
            g1=_uni(pkeys[25], (H,)), be1=_uni(pkeys[26], (H,)),
            W2=_uni(pkeys[27], (H, H // 2)), b2=_uni(pkeys[28], (H // 2,)),
            g2=_uni(pkeys[29], (H // 2,)), be2=_uni(pkeys[30], (H // 2,)),
            W3=_uni(pkeys[31], (H // 2, 1)), b3=_uni(jax.random.fold_in(key, 99), (1,)),
        ),
    }

    fparams = prepare_params(params, H, HEADS)

    dkeys = jax.random.split(jax.random.fold_in(key, 7), 3)
    graph_matrix = jax.random.normal(dkeys[0], (n_nodes, g_len + p_len + loc_len),
                                     jnp.float32)
    interaction = jax.random.normal(dkeys[1], (n_edges, 2), jnp.float32)
    edge_index = jax.random.randint(dkeys[2], (n_edges, 2), 0, n_nodes, jnp.int32)

    fwd = jax.jit(spider_mouse_forward)
    preds, attn = fwd(fparams, graph_matrix, interaction, edge_index)
    jax.block_until_ready(preds)
    jax.block_until_ready(attn)
    assert preds.shape == (n_edges,)
    assert attn.shape == (2, 2 * n_edges)
    print("KERNEL_OK")
</pallas_src>

<mosaic_0001>
module attributes {stable_mosaic.version = 11 : i64} {
  func.func @_node_path_kernel(%arg0: memref<16x28xf32, #tpu.memory_space<vmem>>, %arg1: memref<28x48xf32, #tpu.memory_space<vmem>>, %arg2: memref<1x48xf32, #tpu.memory_space<vmem>>, %arg3: memref<48x96xf32, #tpu.memory_space<vmem>>, %arg4: memref<1x96xf32, #tpu.memory_space<vmem>>, %arg5: memref<96x256xf32, #tpu.memory_space<vmem>>, %arg6: memref<1x256xf32, #tpu.memory_space<vmem>>, %arg7: memref<16x256xf32, #tpu.memory_space<vmem>>) attributes {dimension_semantics = [], scalar_prefetch = 0 : i64, scratch_operands = 0 : i64, tpu.core_type = #tpu.core_type<tc>} {
    %c0 = arith.constant 0 : index
    %c0_0 = arith.constant 0 : index
    %0 = vector.load %arg0[%c0, %c0_0] : memref<16x28xf32, #tpu.memory_space<vmem>>, vector<16x28xf32>
    %c0_1 = arith.constant 0 : index
    %c0_2 = arith.constant 0 : index
    %1 = vector.load %arg1[%c0_1, %c0_2] : memref<28x48xf32, #tpu.memory_space<vmem>>, vector<28x48xf32>
    %cst = arith.constant dense<0.000000e+00> : vector<16x48xf32>
    %2 = tpu.matmul %0, %1, %cst {dimension_numbers = #tpu.dot_dimension_numbers<[1], [0], [0], [1], [0, 0, 1, 1], [], []>} : vector<16x28xf32>, vector<28x48xf32>, vector<16x48xf32> -> vector<16x48xf32>
    %c0_3 = arith.constant 0 : index
    %c0_4 = arith.constant 0 : index
    %3 = vector.load %arg2[%c0_3, %c0_4] : memref<1x48xf32, #tpu.memory_space<vmem>>, vector<1x48xf32>
    %4 = vector.broadcast %3 : vector<1x48xf32> to vector<16x48xf32>
    %5 = arith.addf %2, %4 : vector<16x48xf32>
    %cst_5 = arith.constant 0.000000e+00 : f32
    %6 = vector.broadcast %cst_5 : f32 to vector<16x48xf32>
    %7 = arith.cmpf ogt, %5, %6 : vector<16x48xf32>
    %cst_6 = arith.constant 0.00999999977 : f32
    %8 = vector.broadcast %cst_6 : f32 to vector<16x48xf32>
    %9 = arith.mulf %8, %5 : vector<16x48xf32>
    %10 = arith.select %7, %5, %9 : vector<16x48xi1>, vector<16x48xf32>
    %c0_7 = arith.constant 0 : index
    %c0_8 = arith.constant 0 : index
    %11 = vector.load %arg3[%c0_7, %c0_8] : memref<48x96xf32, #tpu.memory_space<vmem>>, vector<48x96xf32>
    %cst_9 = arith.constant dense<0.000000e+00> : vector<16x96xf32>
    %12 = tpu.matmul %10, %11, %cst_9 {dimension_numbers = #tpu.dot_dimension_numbers<[1], [0], [0], [1], [0, 0, 1, 1], [], []>} : vector<16x48xf32>, vector<48x96xf32>, vector<16x96xf32> -> vector<16x96xf32>
    %c0_10 = arith.constant 0 : index
    %c0_11 = arith.constant 0 : index
    %13 = vector.load %arg4[%c0_10, %c0_11] : memref<1x96xf32, #tpu.memory_space<vmem>>, vector<1x96xf32>
    %14 = vector.broadcast %13 : vector<1x96xf32> to vector<16x96xf32>
    %15 = arith.addf %12, %14 : vector<16x96xf32>
    %cst_12 = arith.constant 0.000000e+00 : f32
    %16 = vector.broadcast %cst_12 : f32 to vector<16x96xf32>
    %17 = arith.cmpf ogt, %15, %16 : vector<16x96xf32>
    %cst_13 = arith.constant 0.00999999977 : f32
    %18 = vector.broadcast %cst_13 : f32 to vector<16x96xf32>
    %19 = arith.mulf %18, %15 : vector<16x96xf32>
    %20 = arith.select %17, %15, %19 : vector<16x96xi1>, vector<16x96xf32>
    %c0_14 = arith.constant 0 : index
    %c0_15 = arith.constant 0 : index
    %21 = vector.load %arg5[%c0_14, %c0_15] : memref<96x256xf32, #tpu.memory_space<vmem>>, vector<96x256xf32>
    %cst_16 = arith.constant dense<0.000000e+00> : vector<16x256xf32>
    %22 = tpu.matmul %20, %21, %cst_16 {dimension_numbers = #tpu.dot_dimension_numbers<[1], [0], [0], [1], [0, 0, 1, 1], [], []>} : vector<16x96xf32>, vector<96x256xf32>, vector<16x256xf32> -> vector<16x256xf32>
    %c0_17 = arith.constant 0 : index
    %c0_18 = arith.constant 0 : index
    %23 = vector.load %arg6[%c0_17, %c0_18] : memref<1x256xf32, #tpu.memory_space<vmem>>, vector<1x256xf32>
    %24 = vector.broadcast %23 : vector<1x256xf32> to vector<16x256xf32>
    %25 = arith.addf %22, %24 : vector<16x256xf32>
    %c0_19 = arith.constant 0 : index
    %c0_20 = arith.constant 0 : index
    %26 = vector.load %arg7[%c0_19, %c0_20] : memref<16x256xf32, #tpu.memory_space<vmem>>, vector<16x256xf32>
    tpu.vector_store %arg7[%c0_19, %c0_20], %25 {strides = array<i32>} : memref<16x256xf32, #tpu.memory_space<vmem>>, vector<16x256xf32>,
    return
  }
}

module attributes {stable_mosaic.version = 11 : i64} {
  func.func @_gat_kernel(%arg0: memref<16x256xf32, #tpu.memory_space<vmem>>, %arg1: memref<16x1xi32, #tpu.memory_space<vmem>>, %arg2: memref<16x1xi32, #tpu.memory_space<vmem>>, %arg3: memref<1x16xi32, #tpu.memory_space<vmem>>, %arg4: memref<128x4xf32, #tpu.memory_space<vmem>>, %arg5: memref<4x128xf32, #tpu.memory_space<vmem>>, %arg6: memref<1x128xf32, #tpu.memory_space<vmem>>, %arg7: memref<16x128xf32, #tpu.memory_space<vmem>>) attributes {dimension_semantics = [], scalar_prefetch = 0 : i64, scratch_operands = 0 : i64, tpu.core_type = #tpu.core_type<tc>} {
    %c0 = arith.constant 0 : index
    %c0_0 = arith.constant 0 : index
    %0 = vector.load %arg0[%c0, %c0_0] : memref<16x256xf32, #tpu.memory_space<vmem>>, vector<16x128xf32>
    %c0_1 = arith.constant 0 : index
    %c128 = arith.constant 128 : index
    %1 = vector.load %arg0[%c0_1, %c128] : memref<16x256xf32, #tpu.memory_space<vmem>>, vector<16x128xf32>
    %2 = tpu.iota {dimensions = array<i32: 1>} : vector<16x16xi32>
    %c0_2 = arith.constant 0 : index
    %c0_3 = arith.constant 0 : index
    %3 = vector.load %arg1[%c0_2, %c0_3] : memref<16x1xi32, #tpu.memory_space<vmem>>, vector<16x1xi32>
    %4 = vector.broadcast %3 : vector<16x1xi32> to vector<16x16xi32>
    %5 = arith.cmpi eq, %4, %2 : vector<16x16xi32>
    %6 = arith.extui %5 : vector<16x16xi1> to vector<16x16xi32>
    %7 = arith.sitofp %6 : vector<16x16xi32> to vector<16x16xf32>
    %c0_4 = arith.constant 0 : index
    %c0_5 = arith.constant 0 : index
    %8 = vector.load %arg2[%c0_4, %c0_5] : memref<16x1xi32, #tpu.memory_space<vmem>>, vector<16x1xi32>
    %9 = vector.broadcast %8 : vector<16x1xi32> to vector<16x16xi32>
    %10 = arith.cmpi eq, %9, %2 : vector<16x16xi32>
    %11 = arith.extui %10 : vector<16x16xi1> to vector<16x16xi32>
    %12 = arith.sitofp %11 : vector<16x16xi32> to vector<16x16xf32>
    %c0_6 = arith.constant 0 : index
    %c0_7 = arith.constant 0 : index
    %13 = vector.load %arg3[%c0_6, %c0_7] : memref<1x16xi32, #tpu.memory_space<vmem>>, vector<1x16xi32>
    %14 = tpu.iota {dimensions = array<i32: 0>} : vector<16x16xi32>
    %15 = vector.broadcast %13 : vector<1x16xi32> to vector<16x16xi32>
    %16 = arith.cmpi eq, %15, %14 : vector<16x16xi32>
    %17 = arith.extui %16 : vector<16x16xi1> to vector<16x16xi32>
    %18 = arith.sitofp %17 : vector<16x16xi32> to vector<16x16xf32>
    %cst = arith.constant dense<0.000000e+00> : vector<16x128xf32>
    %19 = tpu.matmul %7, %0, %cst {dimension_numbers = #tpu.dot_dimension_numbers<[1], [0], [0], [1], [0, 0, 1, 1], [], []>} : vector<16x16xf32>, vector<16x128xf32>, vector<16x128xf32> -> vector<16x128xf32>
    %cst_8 = arith.constant dense<0.000000e+00> : vector<16x128xf32>
    %20 = tpu.matmul %12, %1, %cst_8 {dimension_numbers = #tpu.dot_dimension_numbers<[1], [0], [0], [1], [0, 0, 1, 1], [], []>} : vector<16x16xf32>, vector<16x128xf32>, vector<16x128xf32> -> vector<16x128xf32>
    %21 = arith.addf %19, %20 : vector<16x128xf32>
    %cst_9 = arith.constant 0.000000e+00 : f32
    %22 = vector.broadcast %cst_9 : f32 to vector<16x128xf32>
    %23 = arith.cmpf ogt, %21, %22 : vector<16x128xf32>
    %cst_10 = arith.constant 2.000000e-01 : f32
    %24 = vector.broadcast %cst_10 : f32 to vector<16x128xf32>
    %25 = arith.mulf %24, %21 : vector<16x128xf32>
    %26 = arith.select %23, %21, %25 : vector<16x128xi1>, vector<16x128xf32>
    %c0_11 = arith.constant 0 : index
    %c0_12 = arith.constant 0 : index
    %27 = vector.load %arg4[%c0_11, %c0_12] : memref<128x4xf32, #tpu.memory_space<vmem>>, vector<128x4xf32>
    %cst_13 = arith.constant dense<0.000000e+00> : vector<16x4xf32>
    %28 = tpu.matmul %26, %27, %cst_13 {dimension_numbers = #tpu.dot_dimension_numbers<[1], [0], [0], [1], [0, 0, 1, 1], [], []>} : vector<16x128xf32>, vector<128x4xf32>, vector<16x4xf32> -> vector<16x4xf32>
    %cst_14 = arith.constant dense<0xFF800000> : vector<4xf32>
    %29 = vector.multi_reduction <maximumf>, %28, %cst_14 [0] : vector<16x4xf32> to vector<4xf32>
    %30 = vector.shape_cast %29 : vector<4xf32> to vector<1x4xf32>
    %31 = vector.broadcast %30 : vector<1x4xf32> to vector<16x4xf32>
    %32 = arith.subf %28, %31 : vector<16x4xf32>
    %33 = math.exp %32 : vector<16x4xf32>
    %cst_15 = arith.constant dense<0.000000e+00> : vector<16x4xf32>
    %34 = tpu.matmul %18, %33, %cst_15 {dimension_numbers = #tpu.dot_dimension_numbers<[1], [0], [0], [1], [0, 0, 1, 1], [], []>} : vector<16x16xf32>, vector<16x4xf32>, vector<16x4xf32> -> vector<16x4xf32>
    %cst_16 = arith.constant dense<0.000000e+00> : vector<16x4xf32>
    %35 = tpu.matmul %12, %34, %cst_16 {dimension_numbers = #tpu.dot_dimension_numbers<[1], [0], [0], [1], [0, 0, 1, 1], [], []>} : vector<16x16xf32>, vector<16x4xf32>, vector<16x4xf32> -> vector<16x4xf32>
    %36 = arith.divf %33, %35 : vector<16x4xf32>
    %c0_17 = arith.constant 0 : index
    %c0_18 = arith.constant 0 : index
    %37 = vector.load %arg5[%c0_17, %c0_18] : memref<4x128xf32, #tpu.memory_space<vmem>>, vector<4x128xf32>
    %cst_19 = arith.constant dense<0.000000e+00> : vector<16x128xf32>
    %38 = tpu.matmul %36, %37, %cst_19 {dimension_numbers = #tpu.dot_dimension_numbers<[1], [0], [0], [1], [0, 0, 1, 1], [], []>} : vector<16x4xf32>, vector<4x128xf32>, vector<16x128xf32> -> vector<16x128xf32>
    %39 = arith.mulf %19, %38 : vector<16x128xf32>
    %cst_20 = arith.constant dense<0.000000e+00> : vector<16x128xf32>
    %40 = tpu.matmul %18, %39, %cst_20 {dimension_numbers = #tpu.dot_dimension_numbers<[1], [0], [0], [1], [0, 0, 1, 1], [], []>} : vector<16x16xf32>, vector<16x128xf32>, vector<16x128xf32> -> vector<16x128xf32>
    %c0_21 = arith.constant 0 : index
    %c0_22 = arith.constant 0 : index
    %41 = vector.load %arg6[%c0_21, %c0_22] : memref<1x128xf32, #tpu.memory_space<vmem>>, vector<1x128xf32>
    %42 = vector.broadcast %41 : vector<1x128xf32> to vector<16x128xf32>
    %43 = arith.addf %40, %42 : vector<16x128xf32>
    %c0_23 = arith.constant 0 : index
    %c0_24 = arith.constant 0 : index
    %44 = vector.load %arg7[%c0_23, %c0_24] : memref<16x128xf32, #tpu.memory_space<vmem>>, vector<16x128xf32>
    tpu.vector_store %arg7[%c0_23, %c0_24], %43 {strides = array<i32>} : memref<16x128xf32, #tpu.memory_space<vmem>>, vector<16x128xf32>,
    return
  }
}

module attributes {stable_mosaic.version = 11 : i64} {
  func.func @_edge_tail_kernel(%arg0: memref<16x128xf32, #tpu.memory_space<vmem>>, %arg1: memref<16x1xi32, #tpu.memory_space<vmem>>, %arg2: memref<8x2xf32, #tpu.memory_space<vmem>>, %arg3: memref<128x64xf32, #tpu.memory_space<vmem>>, %arg4: memref<1x64xf32, #tpu.memory_space<vmem>>, %arg5: memref<64x64xf32, #tpu.memory_space<vmem>>, %arg6: memref<1x64xf32, #tpu.memory_space<vmem>>, %arg7: memref<64x32xf32, #tpu.memory_space<vmem>>, %arg8: memref<1x32xf32, #tpu.memory_space<vmem>>, %arg9: memref<2x32xf32, #tpu.memory_space<vmem>>, %arg10: memref<1x32xf32, #tpu.memory_space<vmem>>, %arg11: memref<32x64xf32, #tpu.memory_space<vmem>>, %arg12: memref<1x64xf32, #tpu.memory_space<vmem>>, %arg13: memref<96x32xf32, #tpu.memory_space<vmem>>, %arg14: memref<1x32xf32, #tpu.memory_space<vmem>>, %arg15: memref<32x16xf32, #tpu.memory_space<vmem>>, %arg16: memref<1x16xf32, #tpu.memory_space<vmem>>, %arg17: memref<16x1xf32, #tpu.memory_space<vmem>>, %arg18: memref<1x1xf32, #tpu.memory_space<vmem>>, %arg19: memref<8x1xf32, #tpu.memory_space<vmem>>) attributes {dimension_semantics = [], scalar_prefetch = 0 : i64, scratch_operands = 0 : i64, tpu.core_type = #tpu.core_type<tc>} {
    %c0 = arith.constant 0 : index
    %c0_0 = arith.constant 0 : index
    %0 = vector.load %arg1[%c0, %c0_0] : memref<16x1xi32, #tpu.memory_space<vmem>>, vector<16x1xi32>
    %1 = tpu.iota {dimensions = array<i32: 1>} : vector<16x16xi32>
    %2 = vector.broadcast %0 : vector<16x1xi32> to vector<16x16xi32>
    %3 = arith.cmpi eq, %2, %1 : vector<16x16xi32>
    %4 = arith.extui %3 : vector<16x16xi1> to vector<16x16xi32>
    %5 = arith.sitofp %4 : vector<16x16xi32> to vector<16x16xf32>
    %c0_1 = arith.constant 0 : index
    %c0_2 = arith.constant 0 : index
    %6 = vector.load %arg0[%c0_1, %c0_2] : memref<16x128xf32, #tpu.memory_space<vmem>>, vector<16x128xf32>
    %cst = arith.constant dense<0.000000e+00> : vector<16x128xf32>
    %7 = tpu.matmul %5, %6, %cst {dimension_numbers = #tpu.dot_dimension_numbers<[1], [0], [0], [1], [0, 0, 1, 1], [], []>} : vector<16x16xf32>, vector<16x128xf32>, vector<16x128xf32> -> vector<16x128xf32>
    %c0_3 = arith.constant 0 : index
    %c0_4 = arith.constant 0 : index
    %8 = vector.load %arg3[%c0_3, %c0_4] : memref<128x64xf32, #tpu.memory_space<vmem>>, vector<128x64xf32>
    %cst_5 = arith.constant dense<0.000000e+00> : vector<16x64xf32>
    %9 = tpu.matmul %7, %8, %cst_5 {dimension_numbers = #tpu.dot_dimension_numbers<[1], [0], [0], [1], [0, 0, 1, 1], [], []>} : vector<16x128xf32>, vector<128x64xf32>, vector<16x64xf32> -> vector<16x64xf32>
    %c0_6 = arith.constant 0 : index
    %c0_7 = arith.constant 0 : index
    %10 = vector.load %arg4[%c0_6, %c0_7] : memref<1x64xf32, #tpu.memory_space<vmem>>, vector<1x64xf32>
    %11 = vector.broadcast %10 : vector<1x64xf32> to vector<16x64xf32>
    %12 = arith.addf %9, %11 : vector<16x64xf32>
    %cst_8 = arith.constant 0.000000e+00 : f32
    %13 = vector.broadcast %cst_8 : f32 to vector<16x64xf32>
    %14 = arith.cmpf ogt, %12, %13 : vector<16x64xf32>
    %cst_9 = arith.constant 0.00999999977 : f32
    %15 = vector.broadcast %cst_9 : f32 to vector<16x64xf32>
    %16 = arith.mulf %15, %12 : vector<16x64xf32>
    %17 = arith.select %14, %12, %16 : vector<16x64xi1>, vector<16x64xf32>
    %18 = vector.extract_strided_slice %17 {offsets = [0, 0], sizes = [8, 64], strides = [1, 1]} : vector<16x64xf32> to vector<8x64xf32>
    %19 = vector.extract_strided_slice %17 {offsets = [8, 0], sizes = [8, 64], strides = [1, 1]} : vector<16x64xf32> to vector<8x64xf32>
    %20 = arith.addf %18, %19 : vector<8x64xf32>
    %c0_10 = arith.constant 0 : index
    %c0_11 = arith.constant 0 : index
    %21 = vector.load %arg5[%c0_10, %c0_11] : memref<64x64xf32, #tpu.memory_space<vmem>>, vector<64x64xf32>
    %cst_12 = arith.constant dense<0.000000e+00> : vector<8x64xf32>
    %22 = tpu.matmul %20, %21, %cst_12 {dimension_numbers = #tpu.dot_dimension_numbers<[1], [0], [0], [1], [0, 0, 1, 1], [], []>} : vector<8x64xf32>, vector<64x64xf32>, vector<8x64xf32> -> vector<8x64xf32>
    %c0_13 = arith.constant 0 : index
    %c0_14 = arith.constant 0 : index
    %23 = vector.load %arg6[%c0_13, %c0_14] : memref<1x64xf32, #tpu.memory_space<vmem>>, vector<1x64xf32>
    %24 = vector.broadcast %23 : vector<1x64xf32> to vector<8x64xf32>
    %25 = arith.addf %22, %24 : vector<8x64xf32>
    %cst_15 = arith.constant 0.000000e+00 : f32
    %26 = vector.broadcast %cst_15 : f32 to vector<8x64xf32>
    %27 = arith.cmpf ogt, %25, %26 : vector<8x64xf32>
    %cst_16 = arith.constant 0.00999999977 : f32
    %28 = vector.broadcast %cst_16 : f32 to vector<8x64xf32>
    %29 = arith.mulf %28, %25 : vector<8x64xf32>
    %30 = arith.select %27, %25, %29 : vector<8x64xi1>, vector<8x64xf32>
    %c0_17 = arith.constant 0 : index
    %c0_18 = arith.constant 0 : index
    %31 = vector.load %arg7[%c0_17, %c0_18] : memref<64x32xf32, #tpu.memory_space<vmem>>, vector<64x32xf32>
    %cst_19 = arith.constant dense<0.000000e+00> : vector<8x32xf32>
    %32 = tpu.matmul %30, %31, %cst_19 {dimension_numbers = #tpu.dot_dimension_numbers<[1], [0], [0], [1], [0, 0, 1, 1], [], []>} : vector<8x64xf32>, vector<64x32xf32>, vector<8x32xf32> -> vector<8x32xf32>
    %c0_20 = arith.constant 0 : index
    %c0_21 = arith.constant 0 : index
    %33 = vector.load %arg8[%c0_20, %c0_21] : memref<1x32xf32, #tpu.memory_space<vmem>>, vector<1x32xf32>
    %34 = vector.broadcast %33 : vector<1x32xf32> to vector<8x32xf32>
    %35 = arith.addf %32, %34 : vector<8x32xf32>
    %cst_22 = arith.constant 0.000000e+00 : f32
    %36 = vector.broadcast %cst_22 : f32 to vector<8x32xf32>
    %37 = arith.cmpf ogt, %35, %36 : vector<8x32xf32>
    %cst_23 = arith.constant 0.00999999977 : f32
    %38 = vector.broadcast %cst_23 : f32 to vector<8x32xf32>
    %39 = arith.mulf %38, %35 : vector<8x32xf32>
    %40 = arith.select %37, %35, %39 : vector<8x32xi1>, vector<8x32xf32>
    %c0_24 = arith.constant 0 : index
    %c0_25 = arith.constant 0 : index
    %41 = vector.load %arg2[%c0_24, %c0_25] : memref<8x2xf32, #tpu.memory_space<vmem>>, vector<8x2xf32>
    %c0_26 = arith.constant 0 : index
    %c0_27 = arith.constant 0 : index
    %42 = vector.load %arg9[%c0_26, %c0_27] : memref<2x32xf32, #tpu.memory_space<vmem>>, vector<2x32xf32>
    %cst_28 = arith.constant dense<0.000000e+00> : vector<8x32xf32>
    %43 = tpu.matmul %41, %42, %cst_28 {dimension_numbers = #tpu.dot_dimension_numbers<[1], [0], [0], [1], [0, 0, 1, 1], [], []>} : vector<8x2xf32>, vector<2x32xf32>, vector<8x32xf32> -> vector<8x32xf32>
    %c0_29 = arith.constant 0 : index
    %c0_30 = arith.constant 0 : index
    %44 = vector.load %arg10[%c0_29, %c0_30] : memref<1x32xf32, #tpu.memory_space<vmem>>, vector<1x32xf32>
    %45 = vector.broadcast %44 : vector<1x32xf32> to vector<8x32xf32>
    %46 = arith.addf %43, %45 : vector<8x32xf32>
    %cst_31 = arith.constant 0.000000e+00 : f32
    %47 = vector.broadcast %cst_31 : f32 to vector<8x32xf32>
    %48 = arith.cmpf ogt, %46, %47 : vector<8x32xf32>
    %cst_32 = arith.constant 0.00999999977 : f32
    %49 = vector.broadcast %cst_32 : f32 to vector<8x32xf32>
    %50 = arith.mulf %49, %46 : vector<8x32xf32>
    %51 = arith.select %48, %46, %50 : vector<8x32xi1>, vector<8x32xf32>
    %c0_33 = arith.constant 0 : index
    %c0_34 = arith.constant 0 : index
    %52 = vector.load %arg11[%c0_33, %c0_34] : memref<32x64xf32, #tpu.memory_space<vmem>>, vector<32x64xf32>
    %cst_35 = arith.constant dense<0.000000e+00> : vector<8x64xf32>
    %53 = tpu.matmul %51, %52, %cst_35 {dimension_numbers = #tpu.dot_dimension_numbers<[1], [0], [0], [1], [0, 0, 1, 1], [], []>} : vector<8x32xf32>, vector<32x64xf32>, vector<8x64xf32> -> vector<8x64xf32>
    %c0_36 = arith.constant 0 : index
    %c0_37 = arith.constant 0 : index
    %54 = vector.load %arg12[%c0_36, %c0_37] : memref<1x64xf32, #tpu.memory_space<vmem>>, vector<1x64xf32>
    %55 = vector.broadcast %54 : vector<1x64xf32> to vector<8x64xf32>
    %56 = arith.addf %53, %55 : vector<8x64xf32>
    %cst_38 = arith.constant 0.000000e+00 : f32
    %57 = vector.broadcast %cst_38 : f32 to vector<8x64xf32>
    %58 = arith.cmpf ogt, %56, %57 : vector<8x64xf32>
    %cst_39 = arith.constant 0.00999999977 : f32
    %59 = vector.broadcast %cst_39 : f32 to vector<8x64xf32>
    %60 = arith.mulf %59, %56 : vector<8x64xf32>
    %61 = arith.select %58, %56, %60 : vector<8x64xi1>, vector<8x64xf32>
    %62 = tpu.concatenate %40, %61 in 1 : vector<8x32xf32>, vector<8x64xf32> -> vector<8x96xf32>
    %c0_40 = arith.constant 0 : index
    %c0_41 = arith.constant 0 : index
    %63 = vector.load %arg13[%c0_40, %c0_41] : memref<96x32xf32, #tpu.memory_space<vmem>>, vector<96x32xf32>
    %cst_42 = arith.constant dense<0.000000e+00> : vector<8x32xf32>
    %64 = tpu.matmul %62, %63, %cst_42 {dimension_numbers = #tpu.dot_dimension_numbers<[1], [0], [0], [1], [0, 0, 1, 1], [], []>} : vector<8x96xf32>, vector<96x32xf32>, vector<8x32xf32> -> vector<8x32xf32>
    %c0_43 = arith.constant 0 : index
    %c0_44 = arith.constant 0 : index
    %65 = vector.load %arg14[%c0_43, %c0_44] : memref<1x32xf32, #tpu.memory_space<vmem>>, vector<1x32xf32>
    %66 = vector.broadcast %65 : vector<1x32xf32> to vector<8x32xf32>
    %67 = arith.addf %64, %66 : vector<8x32xf32>
    %cst_45 = arith.constant 0.000000e+00 : f32
    %68 = vector.broadcast %cst_45 : f32 to vector<8x32xf32>
    %69 = arith.cmpf ogt, %67, %68 : vector<8x32xf32>
    %cst_46 = arith.constant 0.00999999977 : f32
    %70 = vector.broadcast %cst_46 : f32 to vector<8x32xf32>
    %71 = arith.mulf %70, %67 : vector<8x32xf32>
    %72 = arith.select %69, %67, %71 : vector<8x32xi1>, vector<8x32xf32>
    %c0_47 = arith.constant 0 : index
    %c0_48 = arith.constant 0 : index
    %73 = vector.load %arg15[%c0_47, %c0_48] : memref<32x16xf32, #tpu.memory_space<vmem>>, vector<32x16xf32>
    %cst_49 = arith.constant dense<0.000000e+00> : vector<8x16xf32>
    %74 = tpu.matmul %72, %73, %cst_49 {dimension_numbers = #tpu.dot_dimension_numbers<[1], [0], [0], [1], [0, 0, 1, 1], [], []>} : vector<8x32xf32>, vector<32x16xf32>, vector<8x16xf32> -> vector<8x16xf32>
    %c0_50 = arith.constant 0 : index
    %c0_51 = arith.constant 0 : index
    %75 = vector.load %arg16[%c0_50, %c0_51] : memref<1x16xf32, #tpu.memory_space<vmem>>, vector<1x16xf32>
    %76 = vector.broadcast %75 : vector<1x16xf32> to vector<8x16xf32>
    %77 = arith.addf %74, %76 : vector<8x16xf32>
    %cst_52 = arith.constant 0.000000e+00 : f32
    %78 = vector.broadcast %cst_52 : f32 to vector<8x16xf32>
    %79 = arith.cmpf ogt, %77, %78 : vector<8x16xf32>
    %cst_53 = arith.constant 0.00999999977 : f32
    %80 = vector.broadcast %cst_53 : f32 to vector<8x16xf32>
    %81 = arith.mulf %80, %77 : vector<8x16xf32>
    %82 = arith.select %79, %77, %81 : vector<8x16xi1>, vector<8x16xf32>
    %c0_54 = arith.constant 0 : index
    %c0_55 = arith.constant 0 : index
    %83 = vector.load %arg17[%c0_54, %c0_55] : memref<16x1xf32, #tpu.memory_space<vmem>>, vector<16x1xf32>
    %cst_56 = arith.constant dense<0.000000e+00> : vector<8x1xf32>
    %84 = tpu.matmul %82, %83, %cst_56 {dimension_numbers = #tpu.dot_dimension_numbers<[1], [0], [0], [1], [0, 0, 1, 1], [], []>} : vector<8x16xf32>, vector<16x1xf32>, vector<8x1xf32> -> vector<8x1xf32>
    %c0_57 = arith.constant 0 : index
    %c0_58 = arith.constant 0 : index
    %85 = vector.load %arg18[%c0_57, %c0_58] : memref<1x1xf32, #tpu.memory_space<vmem>>, vector<1x1xf32>
    %86 = vector.broadcast %85 : vector<1x1xf32> to vector<8x1xf32>
    %87 = arith.addf %84, %86 : vector<8x1xf32>
    %88 = arith.negf %87 : vector<8x1xf32>
    %89 = math.exp %88 : vector<8x1xf32>
    %cst_59 = arith.constant 1.000000e+00 : f32
    %90 = vector.broadcast %cst_59 : f32 to vector<8x1xf32>
    %91 = arith.addf %90, %89 : vector<8x1xf32>
    %92 = arith.divf %90, %91 : vector<8x1xf32>
    %c0_60 = arith.constant 0 : index
    %c0_61 = arith.constant 0 : index
    %93 = vector.load %arg19[%c0_60, %c0_61] : memref<8x1xf32, #tpu.memory_space<vmem>>, vector<8x1xf32>
    tpu.vector_store %arg19[%c0_60, %c0_61], %92 {strides = array<i32>} : memref<8x1xf32, #tpu.memory_space<vmem>>, vector<8x1xf32>,
    return
  }
}

</mosaic_0001>

<llo_original>
// kernel: spider_mouse_forward.3
$region0: #{spider_mouse_forward.3}
  #allocation0 [shape = 'u32[]', space=smem, size = 0x4, offset = 0x4, fixed_abs, tag = 'smem constant byte address 0x4 - core index']
  #allocation1 [shape = 'u32[72,128]{1,0:T(1,128)}', space=vmem, size = 0x9000, scoped, tag = 'internal scratch']
  %s0 = inlined_call_operand.vmem [shape: f32[16,28], index: 0, kind: input, shape index: {}]
  %s1 = inlined_call_operand.vmem [shape: f32[28,48], index: 1, kind: input, shape index: {}]
  %s2 = inlined_call_operand.vmem [shape: f32[1,48], index: 2, kind: input, shape index: {}]
  %s3 = inlined_call_operand.vmem [shape: f32[48,96], index: 3, kind: input, shape index: {}]
  %s4 = inlined_call_operand.vmem [shape: f32[1,96], index: 4, kind: input, shape index: {}]
  %s5 = inlined_call_operand.hbm [shape: f32[96,256], index: 5, kind: input, shape index: {}]
  %s6 = inlined_call_operand.vmem [shape: f32[1,256], index: 6, kind: input, shape index: {}]
  %s7 = inlined_call_operand.vmem [shape: f32[16,256], index: 7, kind: output, shape index: {}]
  %s8 = sld [smem:[#allocation0]]
  $region42: #{spider_mouse_forward.3} parent=0
    _
  %s10 = ssub.s32 1, %s8
  %s11 = scalar_select 0, %s10, %s8
  $region1: #{spider_mouse_forward.3} parent=0
    #allocation2 [shape = 'u8[98304]{0}', space=vmem, size = 0x18000, scoped, tag = 'input window, operand 5, single buffered']
    #allocation3 [shape = 's32[1]{0}', space=sflag, size = 0x4, scoped, tag = 'scoped memory for spider_mouse_forward.3']
    %12 = vsyncpa [#allocation3], 0
    // Predicated region
    $region2: #{spider_mouse_forward.3} parent=1 // pred_check
      _
    $region3: #{spider_mouse_forward.3} parent=1 // pred_check_branch
      %14 = sbr.rel (0) target = $region5
    $region4: #{spider_mouse_forward.3} parent=1 // pred_region
      _
    $region5: #{spider_mouse_forward.3} parent=1 // pred_fallthru
      _
    // Predicated region
    $region6: #{spider_mouse_forward.3} parent=1 // pred_check
      _
    $region7: #{spider_mouse_forward.3} parent=1 // pred_check_branch
      %16 = sbr.rel (0) target = $region9
    $region8: #{spider_mouse_forward.3} parent=1 // pred_region
      _
    $region9: #{spider_mouse_forward.3} parent=1 // pred_fallthru
      _
    // Predicated region
    $region10: #{spider_mouse_forward.3} parent=1 // pred_check
      _
    $region11: #{spider_mouse_forward.3} parent=1 // pred_check_branch
      %18 = sbr.rel (0) target = $region13
    $region12: #{spider_mouse_forward.3} parent=1 // pred_region
      _
    $region13: #{spider_mouse_forward.3} parent=1 // pred_fallthru
      _
    // Predicated region
    $region14: #{spider_mouse_forward.3} parent=1 // pred_check
      _
    $region15: #{spider_mouse_forward.3} parent=1 // pred_check_branch
      %20 = sbr.rel (0) target = $region17
    $region16: #{spider_mouse_forward.3} parent=1 // pred_region
      _
    $region17: #{spider_mouse_forward.3} parent=1 // pred_fallthru
      _
    // Predicated region
    $region18: #{spider_mouse_forward.3} parent=1 // pred_check
      _
    $region19: #{spider_mouse_forward.3} parent=1 // pred_check_branch
      %22 = sbr.rel (0) target = $region21
    $region20: #{spider_mouse_forward.3} parent=1 // pred_region
      _
    $region21: #{spider_mouse_forward.3} parent=1 // pred_fallthru
      _
    // Predicated region
    $region22: #{spider_mouse_forward.3} parent=1 // pred_check
      _
    $region23: #{spider_mouse_forward.3} parent=1 // pred_check_branch
      %24 = sbr.rel (0) target = $region25
    $region24: #{spider_mouse_forward.3} parent=1 // pred_region
      %26 = vsyncadd [#allocation3], 0
      %s27 = sshll.u32 %s5, 4
      %s28 = int_to_ptr.hbm [resolvable:$true] %s27
      %s29 = sshll.u32 [#allocation2], 4
      %s30 = int_to_ptr.vmem [resolvable:$true] %s29
      %35 = dma.hbm_to_vmem [thread:$0]  %s28, 3072, %s30, [#allocation3], 256, 256, 16
    $region25: #{spider_mouse_forward.3} parent=1 // pred_fallthru
      _
    // Predicated region
    $region26: #{spider_mouse_forward.3} parent=1 // pred_check
      _
    $region27: #{spider_mouse_forward.3} parent=1 // pred_check_branch
      %37 = sbr.rel (0) target = $region29
    $region28: #{spider_mouse_forward.3} parent=1 // pred_region
      _
    $region29: #{spider_mouse_forward.3} parent=1 // pred_fallthru
      _
    // Predicated region
    $region30: #{spider_mouse_forward.3} parent=1 // pred_check
      _
    $region31: #{spider_mouse_forward.3} parent=1 // pred_check_branch
      %39 = sbr.rel (0) target = $region33
    $region32: #{spider_mouse_forward.3} parent=1 // pred_region
      %41 = dma.done [#allocation3], 3072
    $region33: #{spider_mouse_forward.3} parent=1 // pred_fallthru
      _
    %v42 = vld [vmem:[%s0] sm:$0xff]
    %v43 = vld [vmem:[%s0 + $0x8] sm:$0xff]
    %v44 = vld [vmem:[%s1] sm:$0xff]
    %v45 = vld [vmem:[%s1 + $0x8] sm:$0xff]
    %v46 = vld [vmem:[%s1 + $0x10] sm:$0xff]
    %v47 = vld [vmem:[%s1 + $0x18] sm:$0xf]
    %v48 = vld [vmem:[%s2] sm:$0x1]
    %v50 = vperm.slane %v48, 0
    %vm52 = vcmask 228352
    %v54 = vsel %vm52, %v42, 0
    %v57 = vsel %vm52, %v43, 0
    %vm59 = vcmask 1043456
    %v61 = vsel %vm59, %v47, 0
    %63 = vmatpush.msra.mxu0 0.0
    %64 = vmatpush.msra.mxu0 0.0
    %65 = vmatpush.msra.mxu0 0.0
    %66 = vmatpush.msra.mxu0 0.0
    %67 = vmatpush.msra.mxu0 0.0
    %68 = vmatpush.msra.mxu0 0.0
    %69 = vmatpush.msra.mxu0 0.0
    %70 = vmatpush.msra.mxu0 0.0
    %71 = vmatpush.msra.mxu0 0.0
    %72 = vmatpush.msra.mxu0 0.0
    %73 = vmatpush.msra.mxu0 0.0
    %74 = vmatpush.msra.mxu0 0.0
    %75 = vmatpush.msra.mxu0 %v61
    %76 = vmatpush.msra.mxu0 %v46
    %77 = vmatpush.msra.mxu0 %v45
    %78 = vmatpush.msra.mxu0 %v44
    %79 = vmatmul.f32.gmra.mxu0 %v54
    %v80 = vpop.f32.mrf.mxu0
    %v81 = vadd.f32 %v50, %v80
    %82 = vmatmul.f32.gmra.mxu0 %v57
    %v83 = vpop.f32.mrf.mxu0
    %v84 = vadd.f32 %v50, %v83
    %85 = vdwg.mxu0
    %vm86 = vcmp.gt.f32.partialorder %v81, 0.0
    %vm87 = vcmp.gt.f32.partialorder %v84, 0.0
    %v88 = vmul.f32 %v81, 0.01
    %v89 = vmul.f32 %v84, 0.01
    %v90 = vsel %vm86, %v81, %v88
    %v91 = vsel %vm87, %v84, %v89
    %v92 = vld [vmem:[%s3] sm:$0xff]
    %v93 = vld [vmem:[%s3 + $0x8] sm:$0xff]
    %v94 = vld [vmem:[%s3 + $0x10] sm:$0xff]
    %v95 = vld [vmem:[%s3 + $0x18] sm:$0xff]
    %v96 = vld [vmem:[%s3 + $0x20] sm:$0xff]
    %v97 = vld [vmem:[%s3 + $0x28] sm:$0xff]
    %v98 = vld [vmem:[%s4] sm:$0x1]
    %v100 = vperm.slane %v98, 0
    %vm102 = vcmask 392192
    %v104 = vsel %vm102, %v90, 0
    %v107 = vsel %vm102, %v91, 0
    %109 = vmatpush.msra.mxu0 0.0
    %110 = vmatpush.msra.mxu0 0.0
    %111 = vmatpush.msra.mxu0 0.0
    %112 = vmatpush.msra.mxu0 0.0
    %113 = vmatpush.msra.mxu0 0.0
    %114 = vmatpush.msra.mxu0 0.0
    %115 = vmatpush.msra.mxu0 0.0
    %116 = vmatpush.msra.mxu0 0.0
    %117 = vmatpush.msra.mxu0 0.0
    %118 = vmatpush.msra.mxu0 0.0
    %119 = vmatpush.msra.mxu0 %v97
    %120 = vmatpush.msra.mxu0 %v96
    %121 = vmatpush.msra.mxu0 %v95
    %122 = vmatpush.msra.mxu0 %v94
    %123 = vmatpush.msra.mxu0 %v93
    %124 = vmatpush.msra.mxu0 %v92
    %125 = vmatmul.f32.gmra.mxu0 %v104
    %v126 = vpop.f32.mrf.mxu0
    %v127 = vadd.f32 %v100, %v126
    %128 = vmatmul.f32.gmra.mxu0 %v107
    %v129 = vpop.f32.mrf.mxu0
    %v130 = vadd.f32 %v100, %v129
    %131 = vdwg.mxu0
    %vm132 = vcmp.gt.f32.partialorder %v127, 0.0
    %vm133 = vcmp.gt.f32.partialorder %v130, 0.0
    %v134 = vmul.f32 %v127, 0.01
    %v135 = vmul.f32 %v130, 0.01
    %v136 = vsel %vm132, %v127, %v134
    %v137 = vsel %vm133, %v130, %v135
    %v138 = vld [vmem:[#allocation2] sm:$0xff]
    %v139 = vld [vmem:[#allocation2 + $0x8] sm:$0xff]
    %v140 = vld [vmem:[#allocation2 + $0x10] sm:$0xff]
    %v141 = vld [vmem:[#allocation2 + $0x18] sm:$0xff]
    %v142 = vld [vmem:[#allocation2 + $0x20] sm:$0xff]
    %v143 = vld [vmem:[#allocation2 + $0x28] sm:$0xff]
    %v144 = vld [vmem:[#allocation2 + $0x30] sm:$0xff]
    %v145 = vld [vmem:[#allocation2 + $0x38] sm:$0xff]
    %v146 = vld [vmem:[#allocation2 + $0x40] sm:$0xff]
    %v147 = vld [vmem:[#allocation2 + $0x48] sm:$0xff]
    %v148 = vld [vmem:[#allocation2 + $0x50] sm:$0xff]
    %v149 = vld [vmem:[#allocation2 + $0x58] sm:$0xff]
    %v150 = vld [vmem:[#allocation2 + $0x60] sm:$0xff]
    %v151 = vld [vmem:[#allocation2 + $0x68] sm:$0xff]
    %v152 = vld [vmem:[#allocation2 + $0x70] sm:$0xff]
    %v153 = vld [vmem:[#allocation2 + $0x78] sm:$0xff]
    %v154 = vld [vmem:[#allocation2 + $0x80] sm:$0xff]
    %v155 = vld [vmem:[#allocation2 + $0x88] sm:$0xff]
    %v156 = vld [vmem:[#allocation2 + $0x90] sm:$0xff]
    %v157 = vld [vmem:[#allocation2 + $0x98] sm:$0xff]
    %v158 = vld [vmem:[#allocation2 + $0xa0] sm:$0xff]
    %v159 = vld [vmem:[#allocation2 + $0xa8] sm:$0xff]
    %v160 = vld [vmem:[#allocation2 + $0xb0] sm:$0xff]
    %v161 = vld [vmem:[#allocation2 + $0xb8] sm:$0xff]
    %v162 = vld [vmem:[%s6] sm:$0x3]
    %v164 = vperm.slane %v162, 0
    %v165 = vperm.slane %v162, 1
    %vm168 = vcmask 785408
    %v170 = vsel %vm168, %v136, 0
    %v173 = vsel %vm168, %v137, 0
    %175 = vmatpush.msra.mxu0 0.0
    %176 = vmatpush.msra.mxu0 0.0
    %177 = vmatpush.msra.mxu0 0.0
    %178 = vmatpush.msra.mxu0 0.0
    %179 = vmatpush.msra.mxu0 %v160
    %180 = vmatpush.msra.mxu0 %v158
    %181 = vmatpush.msra.mxu0 %v156
    %182 = vmatpush.msra.mxu0 %v154
    %183 = vmatpush.msra.mxu0 %v152
    %184 = vmatpush.msra.mxu0 %v150
    %185 = vmatpush.msra.mxu0 %v148
    %186 = vmatpush.msra.mxu0 %v146
    %187 = vmatpush.msra.mxu0 %v144
    %188 = vmatpush.msra.mxu0 %v142
    %189 = vmatpush.msra.mxu0 %v140
    %190 = vmatpush.msra.mxu0 %v138
    %191 = vmatmul.f32.gmra.mxu0 %v170
    %v192 = vpop.f32.mrf.mxu0
    %v193 = vadd.f32 %v164, %v192
    %194 = vmatmul.f32.gmra.mxu0 %v173
    %v195 = vpop.f32.mrf.mxu0
    %v196 = vadd.f32 %v164, %v195
    %197 = vdwg.mxu0
    %198 = vmatpush.msra.mxu0 0.0
    %199 = vmatpush.msra.mxu0 0.0
    %200 = vmatpush.msra.mxu0 0.0
    %201 = vmatpush.msra.mxu0 0.0
    %202 = vmatpush.msra.mxu0 %v161
    %203 = vmatpush.msra.mxu0 %v159
    %204 = vmatpush.msra.mxu0 %v157
    %205 = vmatpush.msra.mxu0 %v155
    %206 = vmatpush.msra.mxu0 %v153
    %207 = vmatpush.msra.mxu0 %v151
    %208 = vmatpush.msra.mxu0 %v149
    %209 = vmatpush.msra.mxu0 %v147
    %210 = vmatpush.msra.mxu0 %v145
    %211 = vmatpush.msra.mxu0 %v143
    %212 = vmatpush.msra.mxu0 %v141
    %213 = vmatpush.msra.mxu0 %v139
    %214 = vmatmul.f32.gmra.mxu0 %v170
    %v215 = vpop.f32.mrf.mxu0
    %v216 = vadd.f32 %v165, %v215
    %217 = vmatmul.f32.gmra.mxu0 %v173
    %v218 = vpop.f32.mrf.mxu0
    %v219 = vadd.f32 %v165, %v218
    %220 = vdwg.mxu0
    %221 = vst [vmem:[%s7] sm:$0xff] %v193
    %222 = vst [vmem:[%s7 + $0x8] sm:$0xff] %v216
    %223 = vst [vmem:[%s7 + $0x10] sm:$0xff] %v196
    %224 = vst [vmem:[%s7 + $0x18] sm:$0xff] %v219
    // Predicated region
    $region34: #{spider_mouse_forward.3} parent=1 // pred_check
      _
    $region35: #{spider_mouse_forward.3} parent=1 // pred_check_branch
      %226 = sbr.rel (0) target = $region37
    $region36: #{spider_mouse_forward.3} parent=1 // pred_region
      _
    $region37: #{spider_mouse_forward.3} parent=1 // pred_fallthru
      _
    // Predicated region
    $region38: #{spider_mouse_forward.3} parent=1 // pred_check
      _
    $region39: #{spider_mouse_forward.3} parent=1 // pred_check_branch
      %228 = sbr.rel (0) target = $region41
    $region40: #{spider_mouse_forward.3} parent=1 // pred_region
      _
    $region41: #{spider_mouse_forward.3} parent=1 // pred_fallthru
      _
    %229 = vsyncpa [#allocation3], 1

// kernel: spider_mouse_forward.4
$region0: #{spider_mouse_forward.4}
  #allocation0 [shape = 'u32[]', space=smem, size = 0x4, offset = 0x4, fixed_abs, tag = 'smem constant byte address 0x4 - core index']
  #allocation1 [shape = 'u32[72,128]{1,0:T(1,128)}', space=vmem, size = 0x9000, scoped, tag = 'internal scratch']
  %s0 = inlined_call_operand.vmem [shape: f32[16,256], index: 0, kind: input, shape index: {}]
  %s1 = inlined_call_operand.vmem [shape: s32[16,1], index: 1, kind: input, shape index: {}]
  %s2 = inlined_call_operand.vmem [shape: s32[16,1], index: 2, kind: input, shape index: {}]
  %s3 = inlined_call_operand.vmem [shape: s32[1,16], index: 3, kind: input, shape index: {}]
  %s4 = inlined_call_operand.vmem [shape: f32[128,4], index: 4, kind: input, shape index: {}]
  %s5 = inlined_call_operand.vmem [shape: f32[4,128], index: 5, kind: input, shape index: {}]
  %s6 = inlined_call_operand.vmem [shape: f32[1,128], index: 6, kind: input, shape index: {}]
  %s7 = inlined_call_operand.vmem [shape: f32[16,128], index: 7, kind: output, shape index: {}]
  %s8 = sld [smem:[#allocation0]]
  $region38: #{spider_mouse_forward.4} parent=0
    _
  %s10 = ssub.s32 1, %s8
  %s11 = scalar_select 0, %s10, %s8
  // Predicated region
  $region2: #{spider_mouse_forward.4} parent=0 // pred_check
    _
  $region3: #{spider_mouse_forward.4} parent=0 // pred_check_branch
    %13 = sbr.rel (0) target = $region5
  $region4: #{spider_mouse_forward.4} parent=0 // pred_region
    _
  $region5: #{spider_mouse_forward.4} parent=0 // pred_fallthru
    _
  // Predicated region
  $region6: #{spider_mouse_forward.4} parent=0 // pred_check
    _
  $region7: #{spider_mouse_forward.4} parent=0 // pred_check_branch
    %15 = sbr.rel (0) target = $region9
  $region8: #{spider_mouse_forward.4} parent=0 // pred_region
    _
  $region9: #{spider_mouse_forward.4} parent=0 // pred_fallthru
    _
  // Predicated region
  $region10: #{spider_mouse_forward.4} parent=0 // pred_check
    _
  $region11: #{spider_mouse_forward.4} parent=0 // pred_check_branch
    %17 = sbr.rel (0) target = $region13
  $region12: #{spider_mouse_forward.4} parent=0 // pred_region
    _
  $region13: #{spider_mouse_forward.4} parent=0 // pred_fallthru
    _
  // Predicated region
  $region14: #{spider_mouse_forward.4} parent=0 // pred_check
    _
  $region15: #{spider_mouse_forward.4} parent=0 // pred_check_branch
    %19 = sbr.rel (0) target = $region17
  $region16: #{spider_mouse_forward.4} parent=0 // pred_region
    _
  $region17: #{spider_mouse_forward.4} parent=0 // pred_fallthru
    _
  // Predicated region
  $region18: #{spider_mouse_forward.4} parent=0 // pred_check
    _
  $region19: #{spider_mouse_forward.4} parent=0 // pred_check_branch
    %21 = sbr.rel (0) target = $region21
  $region20: #{spider_mouse_forward.4} parent=0 // pred_region
    _
  $region21: #{spider_mouse_forward.4} parent=0 // pred_fallthru
    _
  // Predicated region
  $region22: #{spider_mouse_forward.4} parent=0 // pred_check
    _
  $region23: #{spider_mouse_forward.4} parent=0 // pred_check_branch
    %23 = sbr.rel (0) target = $region25
  $region24: #{spider_mouse_forward.4} parent=0 // pred_region
    _
  $region25: #{spider_mouse_forward.4} parent=0 // pred_fallthru
    _
  // Predicated region
  $region26: #{spider_mouse_forward.4} parent=0 // pred_check
    _
  $region27: #{spider_mouse_forward.4} parent=0 // pred_check_branch
    %25 = sbr.rel (0) target = $region29
  $region28: #{spider_mouse_forward.4} parent=0 // pred_region
    _
  $region29: #{spider_mouse_forward.4} parent=0 // pred_fallthru
    _
  %v26 = vld [vmem:[%s0] sm:$0xff]
  %v27 = vld [vmem:[%s0 + $0x10] sm:$0xff]
  %v28 = vld [vmem:[%s0 + $0x8] sm:$0xff]
  %v29 = vld [vmem:[%s0 + $0x18] sm:$0xff]
  %v30 = vlaneseq
  %v31 = vand.u32 %v30, 127
  %v32 = vld [vmem:[%s1] sm:$0xff]
  %v33 = vld [vmem:[%s1 + $0x8] sm:$0xff]
  %34 = vset.pattern.permute.xlu0 0
  %35 = vperm.xlu0 %34, %v32
  %v36 = vpop.permute.xlu0 %35
  %37 = vset.pattern.permute.xlu0 0
  %38 = vperm.xlu0 %37, %v33
  %v39 = vpop.permute.xlu0 %38
  %vm40 = vcmp.eq.s32.totalorder %v36, %v31
  %vm41 = vcmp.eq.s32.totalorder %v39, %v31
  %v42 = vsel %vm40, 1, 0
  %v43 = vsel %vm41, 1, 0
  %v44 = vcvt.s32.f32 %v42
  %v45 = vcvt.s32.f32 %v43
  %v46 = vld [vmem:[%s2] sm:$0xff]
  %v47 = vld [vmem:[%s2 + $0x8] sm:$0xff]
  %48 = vset.pattern.permute.xlu0 0
  %49 = vperm.xlu0 %48, %v46
  %v50 = vpop.permute.xlu0 %49
  %51 = vset.pattern.permute.xlu0 0
  %52 = vperm.xlu0 %51, %v47
  %v53 = vpop.permute.xlu0 %52
  %vm54 = vcmp.eq.s32.totalorder %v50, %v31
  %vm55 = vcmp.eq.s32.totalorder %v53, %v31
  %v56 = vsel %vm54, 1, 0
  %v57 = vsel %vm55, 1, 0
  %v58 = vcvt.s32.f32 %v56
  %v59 = vcvt.s32.f32 %v57
  %v60 = vld [vmem:[%s3] sm:$0x1]
  %v61 = vlaneseq
  %v62 = vshrl.u32 %v61, 7
  %v63 = vadd.s32 %v62, 8
  %v64 = vperm.slane %v60, 0
  %vm65 = vcmp.eq.s32.totalorder %v64, %v62
  %vm66 = vcmp.eq.s32.totalorder %v64, %v63
  %v67 = vsel %vm65, 1, 0
  %v68 = vsel %vm66, 1, 0
  %v69 = vcvt.s32.f32 %v67
  %v70 = vcvt.s32.f32 %v68
  %vm71 = vcmask 130048
  %v73 = vsel %vm71, %v44, 0
  %v76 = vsel %vm71, %v45, 0
  %78 = vmatpush.msra.mxu0 0.0
  %79 = vmatpush.msra.mxu0 0.0
  %80 = vmatpush.msra.mxu0 0.0
  %81 = vmatpush.msra.mxu0 0.0
  %82 = vmatpush.msra.mxu0 0.0
  %83 = vmatpush.msra.mxu0 0.0
  %84 = vmatpush.msra.mxu0 0.0
  %85 = vmatpush.msra.mxu0 0.0
  %86 = vmatpush.msra.mxu0 0.0
  %87 = vmatpush.msra.mxu0 0.0
  %88 = vmatpush.msra.mxu0 0.0
  %89 = vmatpush.msra.mxu0 0.0
  %90 = vmatpush.msra.mxu0 0.0
  %91 = vmatpush.msra.mxu0 0.0
  %92 = vmatpush.msra.mxu0 %v27
  %93 = vmatpush.msra.mxu0 %v26
  %94 = vmatmul.f32.gmra.mxu0 %v73
  %v95 = vpop.f32.mrf.mxu0
  %v96 = vadd.f32 0.0, %v95
  %97 = vmatmul.f32.gmra.mxu0 %v76
  %v98 = vpop.f32.mrf.mxu0
  %v99 = vadd.f32 0.0, %v98
  %100 = vdwg.mxu0
  %v102 = vsel %vm71, %v58, 0
  %v105 = vsel %vm71, %v59, 0
  %107 = vmatpush.msra.mxu0 0.0
  %108 = vmatpush.msra.mxu0 0.0
  %109 = vmatpush.msra.mxu0 0.0
  %110 = vmatpush.msra.mxu0 0.0
  %111 = vmatpush.msra.mxu0 0.0
  %112 = vmatpush.msra.mxu0 0.0
  %113 = vmatpush.msra.mxu0 0.0
  %114 = vmatpush.msra.mxu0 0.0
  %115 = vmatpush.msra.mxu0 0.0
  %116 = vmatpush.msra.mxu0 0.0
  %117 = vmatpush.msra.mxu0 0.0
  %118 = vmatpush.msra.mxu0 0.0
  %119 = vmatpush.msra.mxu0 0.0
  %120 = vmatpush.msra.mxu0 0.0
  %121 = vmatpush.msra.mxu0 %v29
  %122 = vmatpush.msra.mxu0 %v28
  %123 = vmatmul.f32.gmra.mxu0 %v102
  %v124 = vpop.f32.mrf.mxu0
  %v125 = vadd.f32 0.0, %v124
  %126 = vmatmul.f32.gmra.mxu0 %v105
  %v127 = vpop.f32.mrf.mxu0
  %v128 = vadd.f32 0.0, %v127
  %129 = vdwg.mxu0
  %v130 = vadd.f32 %v96, %v125
  %v131 = vadd.f32 %v99, %v128
  %vm132 = vcmp.gt.f32.partialorder %v130, 0.0
  %vm133 = vcmp.gt.f32.partialorder %v131, 0.0
  %v134 = vmul.f32 %v130, 0.2
  %v135 = vmul.f32 %v131, 0.2
  %v136 = vsel %vm132, %v130, %v134
  %v137 = vsel %vm133, %v131, %v135
  %v138 = vld [vmem:[%s4] sm:$0xff]
  %v139 = vld [vmem:[%s4 + $0x8] sm:$0xff]
  %v140 = vld [vmem:[%s4 + $0x10] sm:$0xff]
  %v141 = vld [vmem:[%s4 + $0x18] sm:$0xff]
  %v142 = vld [vmem:[%s4 + $0x20] sm:$0xff]
  %v143 = vld [vmem:[%s4 + $0x28] sm:$0xff]
  %v144 = vld [vmem:[%s4 + $0x30] sm:$0xff]
  %v145 = vld [vmem:[%s4 + $0x38] sm:$0xff]
  %v146 = vld [vmem:[%s4 + $0x40] sm:$0xff]
  %v147 = vld [vmem:[%s4 + $0x48] sm:$0xff]
  %v148 = vld [vmem:[%s4 + $0x50] sm:$0xff]
  %v149 = vld [vmem:[%s4 + $0x58] sm:$0xff]
  %v150 = vld [vmem:[%s4 + $0x60] sm:$0xff]
  %v151 = vld [vmem:[%s4 + $0x68] sm:$0xff]
  %v152 = vld [vmem:[%s4 + $0x70] sm:$0xff]
  %v153 = vld [vmem:[%s4 + $0x78] sm:$0xff]
  %154 = vmatpush.msra.mxu0 %v153
  %155 = vmatpush.msra.mxu0 %v152
  %156 = vmatpush.msra.mxu0 %v151
  %157 = vmatpush.msra.mxu0 %v150
  %158 = vmatpush.msra.mxu0 %v149
  %159 = vmatpush.msra.mxu0 %v148
  %160 = vmatpush.msra.mxu0 %v147
  %161 = vmatpush.msra.mxu0 %v146
  %162 = vmatpush.msra.mxu0 %v145
  %163 = vmatpush.msra.mxu0 %v144
  %164 = vmatpush.msra.mxu0 %v143
  %165 = vmatpush.msra.mxu0 %v142
  %166 = vmatpush.msra.mxu0 %v141
  %167 = vmatpush.msra.mxu0 %v140
  %168 = vmatpush.msra.mxu0 %v139
  %169 = vmatpush.msra.mxu0 %v138
  %170 = vmatmul.f32.gmra.mxu0 %v136
  %v171 = vpop.f32.mrf.mxu0
  %v172 = vadd.f32 0.0, %v171
  %173 = vmatmul.f32.gmra.mxu0 %v137
  %v174 = vpop.f32.mrf.mxu0
  %v175 = vadd.f32 0.0, %v174
  %176 = vdwg.mxu0
  %vm177 = vcmask 31744
  %v178 = vsel %vm177, %v172, -inf
  %v179 = vsel %vm177, %v175, -inf
  %v180 = vmax.f32 %v178, %v179
  %v181 = vrot.slane %v180, 4
  %v182 = vmax.f32 %v180, %v181
  %v183 = vrot.slane %v182, 2
  %v184 = vmax.f32 %v182, %v183
  %v185 = vrot.slane %v184, 1
  %v186 = vmax.f32 %v184, %v185
  %v187 = vsub.f32 %v172, %v186
  %v188 = vsub.f32 %v175, %v186
  %v189 = vmul.f32 %v187, 1.442695
  %v190 = vpow.pop %v189
  %v191 = vmul.f32 %v188, 1.442695
  %v192 = vpow.pop %v191
  %v194 = vsel %vm71, %v69, 0
  %v197 = vsel %vm71, %v70, 0
  %199 = vmatpush.msra.mxu0 0.0
  %200 = vmatpush.msra.mxu0 0.0
  %201 = vmatpush.msra.mxu0 0.0
  %202 = vmatpush.msra.mxu0 0.0
  %203 = vmatpush.msra.mxu0 0.0
  %204 = vmatpush.msra.mxu0 0.0
  %205 = vmatpush.msra.mxu0 0.0
  %206 = vmatpush.msra.mxu0 0.0
  %207 = vmatpush.msra.mxu0 0.0
  %208 = vmatpush.msra.mxu0 0.0
  %209 = vmatpush.msra.mxu0 0.0
  %210 = vmatpush.msra.mxu0 0.0
  %211 = vmatpush.msra.mxu0 0.0
  %212 = vmatpush.msra.mxu0 0.0
  %213 = vmatpush.msra.mxu0 %v192
  %214 = vmatpush.msra.mxu0 %v190
  %215 = vmatmul.f32.gmra.mxu0 %v194
  %v216 = vpop.f32.mrf.mxu0
  %v217 = vadd.f32 0.0, %v216
  %218 = vmatmul.f32.gmra.mxu0 %v197
  %v219 = vpop.f32.mrf.mxu0
  %v220 = vadd.f32 0.0, %v219
  %221 = vdwg.mxu0
  %222 = vmatpush.msra.mxu0 0.0
  %223 = vmatpush.msra.mxu0 0.0
  %224 = vmatpush.msra.mxu0 0.0
  %225 = vmatpush.msra.mxu0 0.0
  %226 = vmatpush.msra.mxu0 0.0
  %227 = vmatpush.msra.mxu0 0.0
  %228 = vmatpush.msra.mxu0 0.0
  %229 = vmatpush.msra.mxu0 0.0
  %230 = vmatpush.msra.mxu0 0.0
  %231 = vmatpush.msra.mxu0 0.0
  %232 = vmatpush.msra.mxu0 0.0
  %233 = vmatpush.msra.mxu0 0.0
  %234 = vmatpush.msra.mxu0 0.0
  %235 = vmatpush.msra.mxu0 0.0
  %236 = vmatpush.msra.mxu0 %v220
  %237 = vmatpush.msra.mxu0 %v217
  %238 = vmatmul.f32.gmra.mxu0 %v102
  %v239 = vpop.f32.mrf.mxu0
  %v240 = vadd.f32 0.0, %v239
  %241 = vmatmul.f32.gmra.mxu0 %v105
  %v242 = vpop.f32.mrf.mxu0
  %v243 = vadd.f32 0.0, %v242
  %244 = vdwg.mxu0
  %v245 = vrcp.pop %v240
  %v246 = vmul.f32 %v240, %v245
  %v247 = vsub.f32 1.0, %v246
  %v248 = vmul.f32 %v245, %v247
  %v249 = vadd.f32 %v245, %v248
  %vm250 = vweird.f32 %v240
  %vm251 = vweird.f32 %v245
  %vm252 = vmor %vm250, %vm251
  %v253 = vsel %vm252, %v245, %v249
  %v254 = vand.u32 2147483647, %v240
  %vm255 = vcmp.eq.f32.partialorder %v254, 8.507059e+37
  %v256 = vand.u32 %v240, 2147483648
  %v257 = vor.u32 1.1754944e-38, %v256
  %v258 = vsel %vm255, %v257, %v253
  %v259 = vmul.f32 %v190, %v258
  %v260 = vrcp.pop %v243
  %v261 = vmul.f32 %v243, %v260
  %v262 = vsub.f32 1.0, %v261
  %v263 = vmul.f32 %v260, %v262
  %v264 = vadd.f32 %v260, %v263
  %vm265 = vweird.f32 %v243
  %vm266 = vweird.f32 %v260
  %vm267 = vmor %vm265, %vm266
  %v268 = vsel %vm267, %v260, %v264
  %v269 = vand.u32 2147483647, %v243
  %vm270 = vcmp.eq.f32.partialorder %v269, 8.507059e+37
  %v271 = vand.u32 %v243, 2147483648
  %v272 = vor.u32 1.1754944e-38, %v271
  %v273 = vsel %vm270, %v272, %v268
  %v274 = vmul.f32 %v192, %v273
  %v275 = vld [vmem:[%s5] sm:$0xf]
  %v277 = vsel %vm177, %v259, 0
  %v280 = vsel %vm177, %v274, 0
  %vm282 = vcmask 1043456
  %v284 = vsel %vm282, %v275, 0
  %286 = vmatpush.msra.mxu0 0.0
  %287 = vmatpush.msra.mxu0 0.0
  %288 = vmatpush.msra.mxu0 0.0
  %289 = vmatpush.msra.mxu0 0.0
  %290 = vmatpush.msra.mxu0 0.0
  %291 = vmatpush.msra.mxu0 0.0
  %292 = vmatpush.msra.mxu0 0.0
  %293 = vmatpush.msra.mxu0 0.0
  %294 = vmatpush.msra.mxu0 0.0
  %295 = vmatpush.msra.mxu0 0.0
  %296 = vmatpush.msra.mxu0 0.0
  %297 = vmatpush.msra.mxu0 0.0
  %298 = vmatpush.msra.mxu0 0.0
  %299 = vmatpush.msra.mxu0 0.0
  %300 = vmatpush.msra.mxu0 0.0
  %301 = vmatpush.msra.mxu0 %v284
  %302 = vmatmul.f32.gmra.mxu0 %v277
  %v303 = vpop.f32.mrf.mxu0
  %v304 = vadd.f32 0.0, %v303
  %305 = vmatmul.f32.gmra.mxu0 %v280
  %v306 = vpop.f32.mrf.mxu0
  %v307 = vadd.f32 0.0, %v306
  %308 = vdwg.mxu0
  %v309 = vmul.f32 %v96, %v304
  %v310 = vmul.f32 %v99, %v307
  %v311 = vld [vmem:[%s6] sm:$0x1]
  %v313 = vperm.slane %v311, 0
  %315 = vmatpush.msra.mxu0 0.0
  %316 = vmatpush.msra.mxu0 0.0
  %317 = vmatpush.msra.mxu0 0.0
  %318 = vmatpush.msra.mxu0 0.0
  %319 = vmatpush.msra.mxu0 0.0
  %320 = vmatpush.msra.mxu0 0.0
  %321 = vmatpush.msra.mxu0 0.0
  %322 = vmatpush.msra.mxu0 0.0
  %323 = vmatpush.msra.mxu0 0.0
  %324 = vmatpush.msra.mxu0 0.0
  %325 = vmatpush.msra.mxu0 0.0
  %326 = vmatpush.msra.mxu0 0.0
  %327 = vmatpush.msra.mxu0 0.0
  %328 = vmatpush.msra.mxu0 0.0
  %329 = vmatpush.msra.mxu0 %v310
  %330 = vmatpush.msra.mxu0 %v309
  %331 = vmatmul.f32.gmra.mxu0 %v194
  %v332 = vpop.f32.mrf.mxu0
  %v333 = vadd.f32 %v313, %v332
  %334 = vmatmul.f32.gmra.mxu0 %v197
  %v335 = vpop.f32.mrf.mxu0
  %v336 = vadd.f32 %v313, %v335
  %337 = vdwg.mxu0
  %338 = vst [vmem:[%s7] sm:$0xff] %v333
  %339 = vst [vmem:[%s7 + $0x8] sm:$0xff] %v336
  // Predicated region
  $region30: #{spider_mouse_forward.4} parent=0 // pred_check
    _
  $region31: #{spider_mouse_forward.4} parent=0 // pred_check_branch
    %341 = sbr.rel (0) target = $region33
  $region32: #{spider_mouse_forward.4} parent=0 // pred_region
    _
  $region33: #{spider_mouse_forward.4} parent=0 // pred_fallthru
    _
  // Predicated region
  $region34: #{spider_mouse_forward.4} parent=0 // pred_check
    _
  $region35: #{spider_mouse_forward.4} parent=0 // pred_check_branch
    %343 = sbr.rel (0) target = $region37
  $region36: #{spider_mouse_forward.4} parent=0 // pred_region
    _
  $region37: #{spider_mouse_forward.4} parent=0 // pred_fallthru
    _

// kernel: spider_mouse_forward.5
$region0: #{spider_mouse_forward.5}
  #allocation0 [shape = 'u32[]', space=smem, size = 0x4, offset = 0x4, fixed_abs, tag = 'smem constant byte address 0x4 - core index']
  #allocation1 [shape = 'u32[72,128]{1,0:T(1,128)}', space=vmem, size = 0x9000, scoped, tag = 'internal scratch']
  #allocation2 [shape = 'f32[1,1]{1,0:T(1,128)S(1)}', space=vmem, size = 0x200, scoped, tag = 'scoped memory for spider_mouse_forward.5']
  %s0 = inlined_call_operand.vmem [shape: f32[16,128], index: 0, kind: input, shape index: {}]
  %s1 = inlined_call_operand.vmem [shape: s32[16,1], index: 1, kind: input, shape index: {}]
  %s2 = inlined_call_operand.vmem [shape: f32[8,2], index: 2, kind: input, shape index: {}]
  %s3 = inlined_call_operand.vmem [shape: f32[128,64], index: 3, kind: input, shape index: {}]
  %s4 = inlined_call_operand.vmem [shape: f32[1,64], index: 4, kind: input, shape index: {}]
  %s5 = inlined_call_operand.vmem [shape: f32[64,64], index: 5, kind: input, shape index: {}]
  %s6 = inlined_call_operand.vmem [shape: f32[1,64], index: 6, kind: input, shape index: {}]
  %s7 = inlined_call_operand.vmem [shape: f32[64,32], index: 7, kind: input, shape index: {}]
  %s8 = inlined_call_operand.vmem [shape: f32[1,32], index: 8, kind: input, shape index: {}]
  %s9 = inlined_call_operand.vmem [shape: f32[2,32], index: 9, kind: input, shape index: {}]
  %s10 = inlined_call_operand.vmem [shape: f32[1,32], index: 10, kind: input, shape index: {}]
  %s11 = inlined_call_operand.vmem [shape: f32[32,64], index: 11, kind: input, shape index: {}]
  %s12 = inlined_call_operand.vmem [shape: f32[1,64], index: 12, kind: input, shape index: {}]
  %s13 = inlined_call_operand.vmem [shape: f32[96,32], index: 13, kind: input, shape index: {}]
  %s14 = inlined_call_operand.vmem [shape: f32[1,32], index: 14, kind: input, shape index: {}]
  %s15 = inlined_call_operand.vmem [shape: f32[32,16], index: 15, kind: input, shape index: {}]
  %s16 = inlined_call_operand.vmem [shape: f32[1,16], index: 16, kind: input, shape index: {}]
  %s17 = inlined_call_operand.vmem [shape: f32[16,1], index: 17, kind: input, shape index: {}]
  %s18 = inlined_call_operand.<no memory space> [shape: f32[1,1], index: 18, kind: input, shape index: {}]
  %s19 = inlined_call_operand.vmem [shape: f32[8,1], index: 19, kind: output, shape index: {}]
  %s20 = sld [smem:[#allocation0]]
  $region86: #{spider_mouse_forward.5} parent=0
    _
  %s22 = ssub.s32 1, %s20
  %s23 = scalar_select 0, %s22, %s20
  %v24 = vstv %s18
  %25 = vst [vmem:[#allocation2] sm:$0x1] %v24
  // Predicated region
  $region2: #{spider_mouse_forward.5} parent=0 // pred_check
    _
  $region3: #{spider_mouse_forward.5} parent=0 // pred_check_branch
    %27 = sbr.rel (0) target = $region5
  $region4: #{spider_mouse_forward.5} parent=0 // pred_region
    _
  $region5: #{spider_mouse_forward.5} parent=0 // pred_fallthru
    _
  // Predicated region
  $region6: #{spider_mouse_forward.5} parent=0 // pred_check
    _
  $region7: #{spider_mouse_forward.5} parent=0 // pred_check_branch
    %29 = sbr.rel (0) target = $region9
  $region8: #{spider_mouse_forward.5} parent=0 // pred_region
    _
  $region9: #{spider_mouse_forward.5} parent=0 // pred_fallthru
    _
  // Predicated region
  $region10: #{spider_mouse_forward.5} parent=0 // pred_check
    _
  $region11: #{spider_mouse_forward.5} parent=0 // pred_check_branch
    %31 = sbr.rel (0) target = $region13
  $region12: #{spider_mouse_forward.5} parent=0 // pred_region
    _
  $region13: #{spider_mouse_forward.5} parent=0 // pred_fallthru
    _
  // Predicated region
  $region14: #{spider_mouse_forward.5} parent=0 // pred_check
    _
  $region15: #{spider_mouse_forward.5} parent=0 // pred_check_branch
    %33 = sbr.rel (0) target = $region17
  $region16: #{spider_mouse_forward.5} parent=0 // pred_region
    _
  $region17: #{spider_mouse_forward.5} parent=0 // pred_fallthru
    _
  // Predicated region
  $region18: #{spider_mouse_forward.5} parent=0 // pred_check
    _
  $region19: #{spider_mouse_forward.5} parent=0 // pred_check_branch
    %35 = sbr.rel (0) target = $region21
  $region20: #{spider_mouse_forward.5} parent=0 // pred_region
    _
  $region21: #{spider_mouse_forward.5} parent=0 // pred_fallthru
    _
  // Predicated region
  $region22: #{spider_mouse_forward.5} parent=0 // pred_check
    _
  $region23: #{spider_mouse_forward.5} parent=0 // pred_check_branch
    %37 = sbr.rel (0) target = $region25
  $region24: #{spider_mouse_forward.5} parent=0 // pred_region
    _
  $region25: #{spider_mouse_forward.5} parent=0 // pred_fallthru
    _
  // Predicated region
  $region26: #{spider_mouse_forward.5} parent=0 // pred_check
    _
  $region27: #{spider_mouse_forward.5} parent=0 // pred_check_branch
    %39 = sbr.rel (0) target = $region29
  $region28: #{spider_mouse_forward.5} parent=0 // pred_region
    _
  $region29: #{spider_mouse_forward.5} parent=0 // pred_fallthru
    _
  // Predicated region
  $region30: #{spider_mouse_forward.5} parent=0 // pred_check
    _
  $region31: #{spider_mouse_forward.5} parent=0 // pred_check_branch
    %41 = sbr.rel (0) target = $region33
  $region32: #{spider_mouse_forward.5} parent=0 // pred_region
    _
  $region33: #{spider_mouse_forward.5} parent=0 // pred_fallthru
    _
  // Predicated region
  $region34: #{spider_mouse_forward.5} parent=0 // pred_check
    _
  $region35: #{spider_mouse_forward.5} parent=0 // pred_check_branch
    %43 = sbr.rel (0) target = $region37
  $region36: #{spider_mouse_forward.5} parent=0 // pred_region
    _
  $region37: #{spider_mouse_forward.5} parent=0 // pred_fallthru
    _
  // Predicated region
  $region38: #{spider_mouse_forward.5} parent=0 // pred_check
    _
  $region39: #{spider_mouse_forward.5} parent=0 // pred_check_branch
    %45 = sbr.rel (0) target = $region41
  $region40: #{spider_mouse_forward.5} parent=0 // pred_region
    _
  $region41: #{spider_mouse_forward.5} parent=0 // pred_fallthru
    _
  // Predicated region
  $region42: #{spider_mouse_forward.5} parent=0 // pred_check
    _
  $region43: #{spider_mouse_forward.5} parent=0 // pred_check_branch
    %47 = sbr.rel (0) target = $region45
  $region44: #{spider_mouse_forward.5} parent=0 // pred_region
    _
  $region45: #{spider_mouse_forward.5} parent=0 // pred_fallthru
    _
  // Predicated region
  $region46: #{spider_mouse_forward.5} parent=0 // pred_check
    _
  $region47: #{spider_mouse_forward.5} parent=0 // pred_check_branch
    %49 = sbr.rel (0) target = $region49
  $region48: #{spider_mouse_forward.5} parent=0 // pred_region
    _
  $region49: #{spider_mouse_forward.5} parent=0 // pred_fallthru
    _
  // Predicated region
  $region50: #{spider_mouse_forward.5} parent=0 // pred_check
    _
  $region51: #{spider_mouse_forward.5} parent=0 // pred_check_branch
    %51 = sbr.rel (0) target = $region53
  $region52: #{spider_mouse_forward.5} parent=0 // pred_region
    _
  $region53: #{spider_mouse_forward.5} parent=0 // pred_fallthru
    _
  // Predicated region
  $region54: #{spider_mouse_forward.5} parent=0 // pred_check
    _
  $region55: #{spider_mouse_forward.5} parent=0 // pred_check_branch
    %53 = sbr.rel (0) target = $region57
  $region56: #{spider_mouse_forward.5} parent=0 // pred_region
    _
  $region57: #{spider_mouse_forward.5} parent=0 // pred_fallthru
    _
  // Predicated region
  $region58: #{spider_mouse_forward.5} parent=0 // pred_check
    _
  $region59: #{spider_mouse_forward.5} parent=0 // pred_check_branch
    %55 = sbr.rel (0) target = $region61
  $region60: #{spider_mouse_forward.5} parent=0 // pred_region
    _
  $region61: #{spider_mouse_forward.5} parent=0 // pred_fallthru
    _
  // Predicated region
  $region62: #{spider_mouse_forward.5} parent=0 // pred_check
    _
  $region63: #{spider_mouse_forward.5} parent=0 // pred_check_branch
    %57 = sbr.rel (0) target = $region65
  $region64: #{spider_mouse_forward.5} parent=0 // pred_region
    _
  $region65: #{spider_mouse_forward.5} parent=0 // pred_fallthru
    _
  // Predicated region
  $region66: #{spider_mouse_forward.5} parent=0 // pred_check
    _
  $region67: #{spider_mouse_forward.5} parent=0 // pred_check_branch
    %59 = sbr.rel (0) target = $region69
  $region68: #{spider_mouse_forward.5} parent=0 // pred_region
    _
  $region69: #{spider_mouse_forward.5} parent=0 // pred_fallthru
    _
  // Predicated region
  $region70: #{spider_mouse_forward.5} parent=0 // pred_check
    _
  $region71: #{spider_mouse_forward.5} parent=0 // pred_check_branch
    %61 = sbr.rel (0) target = $region73
  $region72: #{spider_mouse_forward.5} parent=0 // pred_region
    _
  $region73: #{spider_mouse_forward.5} parent=0 // pred_fallthru
    _
  // Predicated region
  $region74: #{spider_mouse_forward.5} parent=0 // pred_check
    _
  $region75: #{spider_mouse_forward.5} parent=0 // pred_check_branch
    %63 = sbr.rel (0) target = $region77
  $region76: #{spider_mouse_forward.5} parent=0 // pred_region
    _
  $region77: #{spider_mouse_forward.5} parent=0 // pred_fallthru
    _
  %v64 = vld [vmem:[%s1] sm:$0xff]
  %v65 = vld [vmem:[%s1 + $0x8] sm:$0xff]
  %v66 = vlaneseq
  %v67 = vand.u32 %v66, 127
  %68 = vset.pattern.permute.xlu0 0
  %69 = vperm.xlu0 %68, %v64
  %v70 = vpop.permute.xlu0 %69
  %71 = vset.pattern.permute.xlu0 0
  %72 = vperm.xlu0 %71, %v65
  %v73 = vpop.permute.xlu0 %72
  %vm74 = vcmp.eq.s32.totalorder %v70, %v67
  %vm75 = vcmp.eq.s32.totalorder %v73, %v67
  %v76 = vsel %vm74, 1, 0
  %v77 = vsel %vm75, 1, 0
  %v78 = vcvt.s32.f32 %v76
  %v79 = vcvt.s32.f32 %v77
  %v80 = vld [vmem:[%s0] sm:$0xff]
  %v81 = vld [vmem:[%s0 + $0x8] sm:$0xff]
  %vm82 = vcmask 130048
  %v84 = vsel %vm82, %v78, 0
  %v87 = vsel %vm82, %v79, 0
  %89 = vmatpush.msra.mxu0 0.0
  %90 = vmatpush.msra.mxu0 0.0
  %91 = vmatpush.msra.mxu0 0.0
  %92 = vmatpush.msra.mxu0 0.0
  %93 = vmatpush.msra.mxu0 0.0
  %94 = vmatpush.msra.mxu0 0.0
  %95 = vmatpush.msra.mxu0 0.0
  %96 = vmatpush.msra.mxu0 0.0
  %97 = vmatpush.msra.mxu0 0.0
  %98 = vmatpush.msra.mxu0 0.0
  %99 = vmatpush.msra.mxu0 0.0
  %100 = vmatpush.msra.mxu0 0.0
  %101 = vmatpush.msra.mxu0 0.0
  %102 = vmatpush.msra.mxu0 0.0
  %103 = vmatpush.msra.mxu0 %v81
  %104 = vmatpush.msra.mxu0 %v80
  %105 = vmatmul.f32.gmra.mxu0 %v84
  %v106 = vpop.f32.mrf.mxu0
  %v107 = vadd.f32 0.0, %v106
  %108 = vmatmul.f32.gmra.mxu0 %v87
  %v109 = vpop.f32.mrf.mxu0
  %v110 = vadd.f32 0.0, %v109
  %111 = vdwg.mxu0
  %v112 = vld [vmem:[%s3] sm:$0xff]
  %v113 = vld [vmem:[%s3 + $0x8] sm:$0xff]
  %v114 = vld [vmem:[%s3 + $0x10] sm:$0xff]
  %v115 = vld [vmem:[%s3 + $0x18] sm:$0xff]
  %v116 = vld [vmem:[%s3 + $0x20] sm:$0xff]
  %v117 = vld [vmem:[%s3 + $0x28] sm:$0xff]
  %v118 = vld [vmem:[%s3 + $0x30] sm:$0xff]
  %v119 = vld [vmem:[%s3 + $0x38] sm:$0xff]
  %v120 = vld [vmem:[%s3 + $0x40] sm:$0xff]
  %v121 = vld [vmem:[%s3 + $0x48] sm:$0xff]
  %v122 = vld [vmem:[%s3 + $0x50] sm:$0xff]
  %v123 = vld [vmem:[%s3 + $0x58] sm:$0xff]
  %v124 = vld [vmem:[%s3 + $0x60] sm:$0xff]
  %v125 = vld [vmem:[%s3 + $0x68] sm:$0xff]
  %v126 = vld [vmem:[%s3 + $0x70] sm:$0xff]
  %v127 = vld [vmem:[%s3 + $0x78] sm:$0xff]
  %v128 = vld [vmem:[%s4] sm:$0x1]
  %v130 = vperm.slane %v128, 0
  %132 = vmatpush.msra.mxu0 %v127
  %133 = vmatpush.msra.mxu0 %v126
  %134 = vmatpush.msra.mxu0 %v125
  %135 = vmatpush.msra.mxu0 %v124
  %136 = vmatpush.msra.mxu0 %v123
  %137 = vmatpush.msra.mxu0 %v122
  %138 = vmatpush.msra.mxu0 %v121
  %139 = vmatpush.msra.mxu0 %v120
  %140 = vmatpush.msra.mxu0 %v119
  %141 = vmatpush.msra.mxu0 %v118
  %142 = vmatpush.msra.mxu0 %v117
  %143 = vmatpush.msra.mxu0 %v116
  %144 = vmatpush.msra.mxu0 %v115
  %145 = vmatpush.msra.mxu0 %v114
  %146 = vmatpush.msra.mxu0 %v113
  %147 = vmatpush.msra.mxu0 %v112
  %148 = vmatmul.f32.gmra.mxu0 %v107
  %v149 = vpop.f32.mrf.mxu0
  %v150 = vadd.f32 %v130, %v149
  %151 = vmatmul.f32.gmra.mxu0 %v110
  %v152 = vpop.f32.mrf.mxu0
  %v153 = vadd.f32 %v130, %v152
  %154 = vdwg.mxu0
  %vm155 = vcmp.gt.f32.partialorder %v150, 0.0
  %vm156 = vcmp.gt.f32.partialorder %v153, 0.0
  %v157 = vmul.f32 %v150, 0.01
  %v158 = vmul.f32 %v153, 0.01
  %v159 = vsel %vm155, %v150, %v157
  %v160 = vsel %vm156, %v153, %v158
  %v161 = vadd.f32 %v159, %v160
  %v162 = vld [vmem:[%s5] sm:$0xff]
  %v163 = vld [vmem:[%s5 + $0x8] sm:$0xff]
  %v164 = vld [vmem:[%s5 + $0x10] sm:$0xff]
  %v165 = vld [vmem:[%s5 + $0x18] sm:$0xff]
  %v166 = vld [vmem:[%s5 + $0x20] sm:$0xff]
  %v167 = vld [vmem:[%s5 + $0x28] sm:$0xff]
  %v168 = vld [vmem:[%s5 + $0x30] sm:$0xff]
  %v169 = vld [vmem:[%s5 + $0x38] sm:$0xff]
  %v170 = vld [vmem:[%s6] sm:$0x1]
  %v172 = vperm.slane %v170, 0
  %vm174 = vcmask 523264
  %v176 = vsel %vm174, %v161, 0
  %178 = vmatpush.msra.mxu0 0.0
  %179 = vmatpush.msra.mxu0 0.0
  %180 = vmatpush.msra.mxu0 0.0
  %181 = vmatpush.msra.mxu0 0.0
  %182 = vmatpush.msra.mxu0 0.0
  %183 = vmatpush.msra.mxu0 0.0
  %184 = vmatpush.msra.mxu0 0.0
  %185 = vmatpush.msra.mxu0 0.0
  %186 = vmatpush.msra.mxu0 %v169
  %187 = vmatpush.msra.mxu0 %v168
  %188 = vmatpush.msra.mxu0 %v167
  %189 = vmatpush.msra.mxu0 %v166
  %190 = vmatpush.msra.mxu0 %v165
  %191 = vmatpush.msra.mxu0 %v164
  %192 = vmatpush.msra.mxu0 %v163
  %193 = vmatpush.msra.mxu0 %v162
  %194 = vmatmul.f32.gmra.mxu0 %v176
  %v195 = vpop.f32.mrf.mxu0
  %v196 = vadd.f32 %v172, %v195
  %197 = vdwg.mxu0
  %vm198 = vcmp.gt.f32.partialorder %v196, 0.0
  %v199 = vmul.f32 %v196, 0.01
  %v200 = vsel %vm198, %v196, %v199
  %v201 = vld [vmem:[%s7] sm:$0xff]
  %v202 = vld [vmem:[%s7 + $0x8] sm:$0xff]
  %v203 = vld [vmem:[%s7 + $0x10] sm:$0xff]
  %v204 = vld [vmem:[%s7 + $0x18] sm:$0xff]
  %v205 = vld [vmem:[%s7 + $0x20] sm:$0xff]
  %v206 = vld [vmem:[%s7 + $0x28] sm:$0xff]
  %v207 = vld [vmem:[%s7 + $0x30] sm:$0xff]
  %v208 = vld [vmem:[%s7 + $0x38] sm:$0xff]
  %v209 = vld [vmem:[%s8] sm:$0x1]
  %v211 = vperm.slane %v209, 0
  %v214 = vsel %vm174, %v200, 0
  %216 = vmatpush.msra.mxu0 0.0
  %217 = vmatpush.msra.mxu0 0.0
  %218 = vmatpush.msra.mxu0 0.0
  %219 = vmatpush.msra.mxu0 0.0
  %220 = vmatpush.msra.mxu0 0.0
  %221 = vmatpush.msra.mxu0 0.0
  %222 = vmatpush.msra.mxu0 0.0
  %223 = vmatpush.msra.mxu0 0.0
  %224 = vmatpush.msra.mxu0 %v208
  %225 = vmatpush.msra.mxu0 %v207
  %226 = vmatpush.msra.mxu0 %v206
  %227 = vmatpush.msra.mxu0 %v205
  %228 = vmatpush.msra.mxu0 %v204
  %229 = vmatpush.msra.mxu0 %v203
  %230 = vmatpush.msra.mxu0 %v202
  %231 = vmatpush.msra.mxu0 %v201
  %232 = vmatmul.f32.gmra.mxu0 %v214
  %v233 = vpop.f32.mrf.mxu0
  %v234 = vadd.f32 %v211, %v233
  %235 = vdwg.mxu0
  %vm236 = vcmp.gt.f32.partialorder %v234, 0.0
  %v237 = vmul.f32 %v234, 0.01
  %v238 = vsel %vm236, %v234, %v237
  %v239 = vld [vmem:[%s2] sm:$0xff]
  %v240 = vld [vmem:[%s9] sm:$0x3]
  %v241 = vld [vmem:[%s10] sm:$0x1]
  %v243 = vperm.slane %v241, 0
  %vm245 = vcmask 15360
  %v247 = vsel %vm245, %v239, 0
  %vm249 = vcmask 1041408
  %v251 = vsel %vm249, %v240, 0
  %253 = vmatpush.msra.mxu0 0.0
  %254 = vmatpush.msra.mxu0 0.0
  %255 = vmatpush.msra.mxu0 0.0
  %256 = vmatpush.msra.mxu0 0.0
  %257 = vmatpush.msra.mxu0 0.0
  %258 = vmatpush.msra.mxu0 0.0
  %259 = vmatpush.msra.mxu0 0.0
  %260 = vmatpush.msra.mxu0 0.0
  %261 = vmatpush.msra.mxu0 0.0
  %262 = vmatpush.msra.mxu0 0.0
  %263 = vmatpush.msra.mxu0 0.0
  %264 = vmatpush.msra.mxu0 0.0
  %265 = vmatpush.msra.mxu0 0.0
  %266 = vmatpush.msra.mxu0 0.0
  %267 = vmatpush.msra.mxu0 0.0
  %268 = vmatpush.msra.mxu0 %v251
  %269 = vmatmul.f32.gmra.mxu0 %v247
  %v270 = vpop.f32.mrf.mxu0
  %v271 = vadd.f32 %v243, %v270
  %272 = vdwg.mxu0
  %vm273 = vcmp.gt.f32.partialorder %v271, 0.0
  %v274 = vmul.f32 %v271, 0.01
  %v275 = vsel %vm273, %v271, %v274
  %v276 = vld [vmem:[%s11] sm:$0xff]
  %v277 = vld [vmem:[%s11 + $0x8] sm:$0xff]
  %v278 = vld [vmem:[%s11 + $0x10] sm:$0xff]
  %v279 = vld [vmem:[%s11 + $0x18] sm:$0xff]
  %v280 = vld [vmem:[%s12] sm:$0x1]
  %v282 = vperm.slane %v280, 0
  %vm284 = vcmask 261120
  %v286 = vsel %vm284, %v275, 0
  %288 = vmatpush.msra.mxu0 0.0
  %289 = vmatpush.msra.mxu0 0.0
  %290 = vmatpush.msra.mxu0 0.0
  %291 = vmatpush.msra.mxu0 0.0
  %292 = vmatpush.msra.mxu0 0.0
  %293 = vmatpush.msra.mxu0 0.0
  %294 = vmatpush.msra.mxu0 0.0
  %295 = vmatpush.msra.mxu0 0.0
  %296 = vmatpush.msra.mxu0 0.0
  %297 = vmatpush.msra.mxu0 0.0
  %298 = vmatpush.msra.mxu0 0.0
  %299 = vmatpush.msra.mxu0 0.0
  %300 = vmatpush.msra.mxu0 %v279
  %301 = vmatpush.msra.mxu0 %v278
  %302 = vmatpush.msra.mxu0 %v277
  %303 = vmatpush.msra.mxu0 %v276
  %304 = vmatmul.f32.gmra.mxu0 %v286
  %v305 = vpop.f32.mrf.mxu0
  %v306 = vadd.f32 %v282, %v305
  %307 = vdwg.mxu0
  %vm308 = vcmp.gt.f32.partialorder %v306, 0.0
  %v309 = vmul.f32 %v306, 0.01
  %v310 = vsel %vm308, %v306, %v309
  %312 = vrot.lane.b32.xlu0 %v310, 32
  %v313 = vpop.permute.xlu0 %312
  %v315 = vsel %vm284, %v238, %v313
  %v316 = vld [vmem:[%s13] sm:$0xff]
  %v317 = vld [vmem:[%s13 + $0x8] sm:$0xff]
  %v318 = vld [vmem:[%s13 + $0x10] sm:$0xff]
  %v319 = vld [vmem:[%s13 + $0x18] sm:$0xff]
  %v320 = vld [vmem:[%s13 + $0x20] sm:$0xff]
  %v321 = vld [vmem:[%s13 + $0x28] sm:$0xff]
  %v322 = vld [vmem:[%s13 + $0x30] sm:$0xff]
  %v323 = vld [vmem:[%s13 + $0x38] sm:$0xff]
  %v324 = vld [vmem:[%s13 + $0x40] sm:$0xff]
  %v325 = vld [vmem:[%s13 + $0x48] sm:$0xff]
  %v326 = vld [vmem:[%s13 + $0x50] sm:$0xff]
  %v327 = vld [vmem:[%s13 + $0x58] sm:$0xff]
  %v328 = vld [vmem:[%s14] sm:$0x1]
  %v330 = vperm.slane %v328, 0
  %vm332 = vcmask 785408
  %v334 = vsel %vm332, %v315, 0
  %336 = vmatpush.msra.mxu0 0.0
  %337 = vmatpush.msra.mxu0 0.0
  %338 = vmatpush.msra.mxu0 0.0
  %339 = vmatpush.msra.mxu0 0.0
  %340 = vmatpush.msra.mxu0 %v327
  %341 = vmatpush.msra.mxu0 %v326
  %342 = vmatpush.msra.mxu0 %v325
  %343 = vmatpush.msra.mxu0 %v324
  %344 = vmatpush.msra.mxu0 %v323
  %345 = vmatpush.msra.mxu0 %v322
  %346 = vmatpush.msra.mxu0 %v321
  %347 = vmatpush.msra.mxu0 %v320
  %348 = vmatpush.msra.mxu0 %v319
  %349 = vmatpush.msra.mxu0 %v318
  %350 = vmatpush.msra.mxu0 %v317
  %351 = vmatpush.msra.mxu0 %v316
  %352 = vmatmul.f32.gmra.mxu0 %v334
  %v353 = vpop.f32.mrf.mxu0
  %v354 = vadd.f32 %v330, %v353
  %355 = vdwg.mxu0
  %vm356 = vcmp.gt.f32.partialorder %v354, 0.0
  %v357 = vmul.f32 %v354, 0.01
  %v358 = vsel %vm356, %v354, %v357
  %v359 = vld [vmem:[%s15] sm:$0xff]
  %v360 = vld [vmem:[%s15 + $0x8] sm:$0xff]
  %v361 = vld [vmem:[%s15 + $0x10] sm:$0xff]
  %v362 = vld [vmem:[%s15 + $0x18] sm:$0xff]
  %v363 = vld [vmem:[%s16] sm:$0x1]
  %v365 = vperm.slane %v363, 0
  %v368 = vsel %vm284, %v358, 0
  %370 = vmatpush.msra.mxu0 0.0
  %371 = vmatpush.msra.mxu0 0.0
  %372 = vmatpush.msra.mxu0 0.0
  %373 = vmatpush.msra.mxu0 0.0
  %374 = vmatpush.msra.mxu0 0.0
  %375 = vmatpush.msra.mxu0 0.0
  %376 = vmatpush.msra.mxu0 0.0
  %377 = vmatpush.msra.mxu0 0.0
  %378 = vmatpush.msra.mxu0 0.0
  %379 = vmatpush.msra.mxu0 0.0
  %380 = vmatpush.msra.mxu0 0.0
  %381 = vmatpush.msra.mxu0 0.0
  %382 = vmatpush.msra.mxu0 %v362
  %383 = vmatpush.msra.mxu0 %v361
  %384 = vmatpush.msra.mxu0 %v360
  %385 = vmatpush.msra.mxu0 %v359
  %386 = vmatmul.f32.gmra.mxu0 %v368
  %v387 = vpop.f32.mrf.mxu0
  %v388 = vadd.f32 %v365, %v387
  %389 = vdwg.mxu0
  %vm390 = vcmp.gt.f32.partialorder %v388, 0.0
  %v391 = vmul.f32 %v388, 0.01
  %v392 = vsel %vm390, %v388, %v391
  %v393 = vld [vmem:[%s17] sm:$0xff]
  %v394 = vld [vmem:[%s17 + $0x8] sm:$0xff]
  %v395 = vld [vmem:[#allocation2] sm:$0x1]
  %v397 = vperm.slane %v395, 0
  %v400 = vsel %vm82, %v392, 0
  %402 = vmatpush.msra.mxu0 0.0
  %403 = vmatpush.msra.mxu0 0.0
  %404 = vmatpush.msra.mxu0 0.0
  %405 = vmatpush.msra.mxu0 0.0
  %406 = vmatpush.msra.mxu0 0.0
  %407 = vmatpush.msra.mxu0 0.0
  %408 = vmatpush.msra.mxu0 0.0
  %409 = vmatpush.msra.mxu0 0.0
  %410 = vmatpush.msra.mxu0 0.0
  %411 = vmatpush.msra.mxu0 0.0
  %412 = vmatpush.msra.mxu0 0.0
  %413 = vmatpush.msra.mxu0 0.0
  %414 = vmatpush.msra.mxu0 0.0
  %415 = vmatpush.msra.mxu0 0.0
  %416 = vmatpush.msra.mxu0 %v394
  %417 = vmatpush.msra.mxu0 %v393
  %418 = vmatmul.f32.gmra.mxu0 %v400
  %v419 = vpop.f32.mrf.mxu0
  %v420 = vadd.f32 %v397, %v419
  %421 = vdwg.mxu0
  %v422 = vxor.u32 %v420, 2147483648
  %v423 = vmul.f32 %v422, 1.442695
  %v424 = vpow.pop %v423
  %v425 = vadd.f32 %v424, 1.0
  %v426 = vrcp.pop %v425
  %v427 = vmul.f32 %v425, %v426
  %v428 = vsub.f32 1.0, %v427
  %v429 = vmul.f32 %v426, %v428
  %v430 = vadd.f32 %v426, %v429
  %vm431 = vweird.f32 %v425
  %vm432 = vweird.f32 %v426
  %vm433 = vmor %vm431, %vm432
  %v434 = vsel %vm433, %v426, %v430
  %v435 = vand.u32 2147483647, %v425
  %vm436 = vcmp.eq.f32.partialorder %v435, 8.507059e+37
  %v437 = vand.u32 %v425, 2147483648
  %v438 = vor.u32 1.1754944e-38, %v437
  %v439 = vsel %vm436, %v438, %v434
  %v440 = vmul.f32 1.0, %v439
  %vm441 = vcmask 7168
  %442 = vst.msk [vmem:[%s19] sm:$0xff] %vm441, %v440
  // Predicated region
  $region78: #{spider_mouse_forward.5} parent=0 // pred_check
    _
  $region79: #{spider_mouse_forward.5} parent=0 // pred_check_branch
    %444 = sbr.rel (0) target = $region81
  $region80: #{spider_mouse_forward.5} parent=0 // pred_region
    _
  $region81: #{spider_mouse_forward.5} parent=0 // pred_fallthru
    _
  // Predicated region
  $region82: #{spider_mouse_forward.5} parent=0 // pred_check
    _
  $region83: #{spider_mouse_forward.5} parent=0 // pred_check_branch
    %446 = sbr.rel (0) target = $region85
  $region84: #{spider_mouse_forward.5} parent=0 // pred_region
    _
  $region85: #{spider_mouse_forward.5} parent=0 // pred_fallthru
    _

</llo_original>
